<compile_context>
chip_gen: v6e
topology: v6e:2x2x1
jax: 0.10.0
libtpu: 0.0.40
codegen_flags: <defaults>
</compile_context>

<pallas_src>
import jax
import jax.numpy as jnp
from jax.experimental import pallas as pl
from jax.experimental.pallas import tpu as pltpu


# ---------------------------------------------------------------------------
# Pallas kernel: split edge MLP -> in-kernel gather -> masked neighbor sum ->
#                split node MLP -> residual add
# ---------------------------------------------------------------------------
def egnn_kernel(feats_ref, idx_ref, dist_ref, maskf_ref,
                w1i_ref, w1j_ref, w1d_ref, b1_ref,
                w2_ref, b2_ref,
                w3f_ref, w3m_ref, b3_ref,
                w4_ref, b4_ref,
                out_ref):
    f32 = jnp.float32
    bf16 = jnp.bfloat16

    f = feats_ref[0]                                  # [N, D] f32
    fb = f.astype(bf16)
    n = f.shape[0]
    k = idx_ref.shape[1]
    h_dim = w1i_ref.shape[1]
    m_dim = w2_ref.shape[1]

    def silu(x):
        return x * jax.nn.sigmoid(x)

    # --- edge MLP layer 1 (split w1): project node feats once per node ------
    p_i = jnp.dot(fb, w1i_ref[...], preferred_element_type=f32)        # [N, H]
    p_j = jnp.dot(fb, w1j_ref[...], preferred_element_type=f32)        # [N, H]

    # in-kernel neighbor gather of projected feats via one-hot MXU matmul
    # (TODO(synk): could become jnp.take / DMA gather once dynamic-gather
    #  lowering is guaranteed; one-hot matmul is the safe TPU path here).
    idx = idx_ref[0]                                                   # [K, N] i32
    iota = jax.lax.broadcasted_iota(jnp.int32, (k, n, n), 2)
    onehot = (idx[:, :, None] == iota).astype(f32).astype(bf16)        # [K, N, N]
    g_j = jnp.dot(onehot.reshape(k * n, n), p_j.astype(bf16),
                  preferred_element_type=f32).reshape(k, n, h_dim)     # [K, N, H]

    dist = dist_ref[0]                                                 # [K, N] f32
    h = p_i[None, :, :] + g_j + dist[:, :, None] * w1d_ref[...] + b1_ref[...]
    h = silu(h)                                                        # [K, N, H]

    # --- edge MLP layer 2 ----------------------------------------------------
    m = jnp.dot(h.reshape(k * n, h_dim).astype(bf16), w2_ref[...],
                preferred_element_type=f32) + b2_ref[...]
    m = silu(m).reshape(k, n, m_dim)                                   # [K, N, M]

    # --- mask invalid edges, reduce over the neighbor axis -------------------
    m = m * maskf_ref[0][:, :, None]
    m_i = jnp.sum(m, axis=0)                                           # [N, M]

    # --- node MLP (split w3 avoids a lane-dim concat) + residual -------------
    h2 = (jnp.dot(fb, w3f_ref[...], preferred_element_type=f32)
          + jnp.dot(m_i.astype(bf16), w3m_ref[...], preferred_element_type=f32)
          + b3_ref[...])
    h2 = silu(h2)                                                      # [N, 2D]
    out = jnp.dot(h2.astype(bf16), w4_ref[...],
                  preferred_element_type=f32) + b4_ref[...]            # [N, D]
    out_ref[0] = (out + f).astype(out_ref.dtype)


def egnn_pallas_call(feats, nbhd_idx, nbhd_dist, edge_mask, kparams):
    B, N, D = feats.shape
    K = nbhd_idx.shape[1]
    assert nbhd_idx.shape == (B, K, N)
    assert nbhd_dist.shape == (B, K, N)
    assert edge_mask.shape == (B, K, N)

    (w1_i, w1_j, w1_d, b1, w2, b2, w3_f, w3_m, b3, w4, b4) = kparams

    def const_spec(arr):
        nd = arr.ndim
        return pl.BlockSpec(arr.shape, lambda b, _nd=nd: (0,) * _nd)

    return pl.pallas_call(
        egnn_kernel,
        out_shape=jax.ShapeDtypeStruct((B, N, D), jnp.float32),
        grid=(B,),
        in_specs=[
            pl.BlockSpec((1, N, D), lambda b: (b, 0, 0)),   # feats
            pl.BlockSpec((1, K, N), lambda b: (b, 0, 0)),   # nbhd_idx
            pl.BlockSpec((1, K, N), lambda b: (b, 0, 0)),   # nbhd_dist
            pl.BlockSpec((1, K, N), lambda b: (b, 0, 0)),   # edge_mask
            const_spec(w1_i), const_spec(w1_j), const_spec(w1_d), const_spec(b1),
            const_spec(w2), const_spec(b2),
            const_spec(w3_f), const_spec(w3_m), const_spec(b3),
            const_spec(w4), const_spec(b4),
        ],
        out_specs=pl.BlockSpec((1, N, D), lambda b: (b, 0, 0)),
        compiler_params=pltpu.CompilerParams(dimension_semantics=("parallel",)),
    )(feats, nbhd_idx, nbhd_dist, edge_mask,
      w1_i, w1_j, w1_d, b1, w2, b2, w3_f, w3_m, b3, w4, b4)


def split_params_for_kernel(params):
    """Split/cast the Linear params for the fused kernel (bf16 matmul weights)."""
    w1, b1, w2, b2, w3, b3, w4, b4 = params
    bf16 = jnp.bfloat16
    D = (w1.shape[0] - 1) // 2
    w1_i = w1[:D].astype(bf16)                 # [D, H]  (feats_i columns)
    w1_j = w1[D:2 * D].astype(bf16)            # [D, H]  (feats_j columns)
    w1_d = w1[2 * D:2 * D + 1]                 # [1, H]  (distance column, f32)
    w3_f = w3[:D].astype(bf16)                 # [D, 2D]
    w3_m = w3[D:].astype(bf16)                 # [M, 2D]
    return (w1_i, w1_j, w1_d, b1,
            w2.astype(bf16), b2,
            w3_f, w3_m, b3,
            w4.astype(bf16), b4)


# ---------------------------------------------------------------------------
# JAX glue: neighbor selection (topk) + tiny per-batch side tensors, then the
# fused Pallas kernel.
# ---------------------------------------------------------------------------
def egnn_forward(feats, coors, mask, adj_mat, params, num_nearest):
    B, N, D = feats.shape

    rel_coors = coors[:, :, None, :] - coors[:, None, :, :]            # [B,N,N,3]
    rel_dist = jnp.sum(rel_coors ** 2, axis=-1)                        # [B,N,N]

    ranking = jnp.where(mask[:, :, None] & mask[:, None, :], rel_dist, 1e5)
    eye = jnp.eye(N, dtype=bool)[None]
    adj = jnp.where(eye, False, adj_mat)
    ranking = jnp.where(eye, -1.0, ranking)
    ranking = jnp.where(adj, 0.0, ranking)

    # smallest-k == top_k of negated ranking
    neg_vals, nbhd_indices = jax.lax.top_k(-ranking, num_nearest)      # [B,N,K]
    nbhd_mask = (-neg_vals) <= 0.0                                     # valid_radius = 0

    rel_dist_sel = jnp.take_along_axis(rel_dist, nbhd_indices, axis=2)  # [B,N,K]
    mask_j = jax.vmap(lambda m, ix: m[ix])(mask, nbhd_indices)          # [B,N,K]
    comb_mask = mask[:, :, None] & mask_j & nbhd_mask                   # [B,N,K]

    # neighbor-major [B, K, N] side tensors (N on lanes, no K*N edge slab)
    idx_kn = jnp.transpose(nbhd_indices, (0, 2, 1)).astype(jnp.int32)
    dist_kn = jnp.transpose(rel_dist_sel, (0, 2, 1)).astype(jnp.float32)
    mask_kn = jnp.transpose(comb_mask, (0, 2, 1)).astype(jnp.float32)

    kparams = split_params_for_kernel(params)
    node_out = egnn_pallas_call(feats.astype(jnp.float32), idx_kn, dist_kn,
                                mask_kn, kparams)
    return node_out, coors


# pure-JAX f32 reference of the whole forward (for a sanity check)
def egnn_forward_ref(feats, coors, mask, adj_mat, params, num_nearest):
    B, N, D = feats.shape
    w1, b1, w2, b2, w3, b3, w4, b4 = params

    rel_coors = coors[:, :, None, :] - coors[:, None, :, :]
    rel_dist = jnp.sum(rel_coors ** 2, axis=-1)
    ranking = jnp.where(mask[:, :, None] & mask[:, None, :], rel_dist, 1e5)
    eye = jnp.eye(N, dtype=bool)[None]
    adj = jnp.where(eye, False, adj_mat)
    ranking = jnp.where(eye, -1.0, ranking)
    ranking = jnp.where(adj, 0.0, ranking)
    neg_vals, idx = jax.lax.top_k(-ranking, num_nearest)
    nbhd_mask = (-neg_vals) <= 0.0
    rel_dist_sel = jnp.take_along_axis(rel_dist, idx, axis=2)
    feats_j = jax.vmap(lambda f, ix: f[ix])(feats, idx)
    mask_j = jax.vmap(lambda m, ix: m[ix])(mask, idx)
    feats_i = jnp.broadcast_to(feats[:, :, None, :], feats_j.shape)
    edge_input = jnp.concatenate([feats_i, feats_j, rel_dist_sel[..., None]], -1)

    silu = lambda x: x * jax.nn.sigmoid(x)
    m_ij = silu(silu(edge_input @ w1 + b1[0]) @ w2 + b2[0])
    comb = (mask[:, :, None] & mask_j & nbhd_mask)[..., None]
    m_ij = jnp.where(comb, m_ij, 0.0)
    m_i = m_ij.sum(-2)
    x = jnp.concatenate([feats, m_i], -1)
    node_out = silu(x @ w3 + b3[0]) @ w4 + b4[0] + feats
    return node_out, coors


def init_linear(key, fan_in, fan_out, std=1e-3):
    kw, kb = jax.random.split(key)
    w = jax.random.normal(kw, (fan_in, fan_out), jnp.float32) * std
    bound = 1.0 / (fan_in ** 0.5)
    b = jax.random.uniform(kb, (1, fan_out), jnp.float32, minval=-bound, maxval=bound)
    return w, b


if __name__ == "__main__":
    # module hyper-params (config-free constructor path)
    B, N = 2, 16
    DIM = 32                 # dim
    M_DIM = 16               # m_dim
    HIDDEN_EDGE = 32         # hidden_edge_dim
    EDGE_IN = 2 * DIM + 1    # edge_input_dim

    key = jax.random.PRNGKey(0)
    k_feats, k_coors, k_p1, k_p2, k_p3, k_p4 = jax.random.split(key, 6)

    feats = jax.random.normal(k_feats, (B, N, DIM), jnp.float32)
    coors = jax.random.normal(k_coors, (B, N, 3), jnp.float32)

    lengths = jnp.array([N, N - 3])
    mask = jnp.arange(N)[None, :] < lengths[:, None]                   # [B, N] bool

    idxs = jnp.arange(N)
    band = jnp.abs(idxs[:, None] - idxs[None, :])
    adj_mat = jnp.broadcast_to((band >= 1) & (band <= 2), (B, N, N))   # [B, N, N] bool

    # num_nearest is data-dependent in the PyTorch code; compute it concretely
    num_nearest = int(jnp.max(jnp.sum(adj_mat.astype(jnp.float32), axis=-1)))

    # deterministic parameter init (Linear weights ~ N(0, init_eps))
    w1, b1 = init_linear(k_p1, EDGE_IN, HIDDEN_EDGE)
    w2, b2 = init_linear(k_p2, HIDDEN_EDGE, M_DIM)
    w3, b3 = init_linear(k_p3, DIM + M_DIM, 2 * DIM)
    w4, b4 = init_linear(k_p4, 2 * DIM, DIM)
    params = (w1, b1, w2, b2, w3, b3, w4, b4)

    node_out, coors_out = egnn_forward(feats, coors, mask, adj_mat, params, num_nearest)
    node_out = jax.block_until_ready(node_out)

    node_ref, _ = egnn_forward_ref(feats, coors, mask, adj_mat, params, num_nearest)
    assert node_out.shape == (B, N, DIM)
    assert jnp.allclose(node_out, node_ref, atol=2e-3, rtol=1e-2)

    print("KERNEL_OK")
</pallas_src>

<mosaic_0001>
module attributes {stable_mosaic.version = 11 : i64} {
  func.func @egnn_kernel(%arg0: i32, %arg1: memref<1x16x32xf32, #tpu.memory_space<vmem>>, %arg2: memref<1x4x16xi32, #tpu.memory_space<vmem>>, %arg3: memref<1x4x16xf32, #tpu.memory_space<vmem>>, %arg4: memref<1x4x16xf32, #tpu.memory_space<vmem>>, %arg5: memref<32x32xbf16, #tpu.memory_space<vmem>>, %arg6: memref<32x32xbf16, #tpu.memory_space<vmem>>, %arg7: memref<1x32xf32, #tpu.memory_space<vmem>>, %arg8: memref<1x32xf32, #tpu.memory_space<vmem>>, %arg9: memref<32x16xbf16, #tpu.memory_space<vmem>>, %arg10: memref<1x16xf32, #tpu.memory_space<vmem>>, %arg11: memref<32x64xbf16, #tpu.memory_space<vmem>>, %arg12: memref<16x64xbf16, #tpu.memory_space<vmem>>, %arg13: memref<1x64xf32, #tpu.memory_space<vmem>>, %arg14: memref<64x32xbf16, #tpu.memory_space<vmem>>, %arg15: memref<1x32xf32, #tpu.memory_space<vmem>>, %arg16: memref<1x16x32xf32, #tpu.memory_space<vmem>>) attributes {dimension_semantics = [#tpu.dimension_semantics<parallel>], iteration_bounds = array<i64: 2>, scalar_prefetch = 0 : i64, scratch_operands = 0 : i64, tpu.core_type = #tpu.core_type<tc>, window_params = [{transform_indices = @transform_0, window_bounds = array<i64: 1, 16, 32>}, {transform_indices = @transform_1, window_bounds = array<i64: 1, 4, 16>}, {transform_indices = @transform_2, window_bounds = array<i64: 1, 4, 16>}, {transform_indices = @transform_3, window_bounds = array<i64: 1, 4, 16>}, {pipeline_mode = #tpu.pipeline_mode<synchronous>, transform_indices = @transform_4, window_bounds = array<i64: 32, 32>}, {pipeline_mode = #tpu.pipeline_mode<synchronous>, transform_indices = @transform_5, window_bounds = array<i64: 32, 32>}, {pipeline_mode = #tpu.pipeline_mode<synchronous>, transform_indices = @transform_6, window_bounds = array<i64: 1, 32>}, {pipeline_mode = #tpu.pipeline_mode<synchronous>, transform_indices = @transform_7, window_bounds = array<i64: 1, 32>}, {pipeline_mode = #tpu.pipeline_mode<synchronous>, transform_indices = @transform_8, window_bounds = array<i64: 32, 16>}, {pipeline_mode = #tpu.pipeline_mode<synchronous>, transform_indices = @transform_9, window_bounds = array<i64: 1, 16>}, {pipeline_mode = #tpu.pipeline_mode<synchronous>, transform_indices = @transform_10, window_bounds = array<i64: 32, 64>}, {pipeline_mode = #tpu.pipeline_mode<synchronous>, transform_indices = @transform_11, window_bounds = array<i64: 16, 64>}, {pipeline_mode = #tpu.pipeline_mode<synchronous>, transform_indices = @transform_12, window_bounds = array<i64: 1, 64>}, {pipeline_mode = #tpu.pipeline_mode<synchronous>, transform_indices = @transform_13, window_bounds = array<i64: 64, 32>}, {pipeline_mode = #tpu.pipeline_mode<synchronous>, transform_indices = @transform_14, window_bounds = array<i64: 1, 32>}, {transform_indices = @transform_15, window_bounds = array<i64: 1, 16, 32>}]} {
    %c0 = arith.constant 0 : index
    %c0_0 = arith.constant 0 : index
    %c0_1 = arith.constant 0 : index
    %0 = vector.load %arg1[%c0, %c0_0, %c0_1] : memref<1x16x32xf32, #tpu.memory_space<vmem>>, vector<1x16x32xf32>
    %1 = vector.shape_cast %0 : vector<1x16x32xf32> to vector<16x32xf32>
    %2 = arith.truncf %1 : vector<16x32xf32> to vector<16x32xbf16>
    %c0_2 = arith.constant 0 : index
    %c0_3 = arith.constant 0 : index
    %3 = vector.load %arg5[%c0_2, %c0_3] : memref<32x32xbf16, #tpu.memory_space<vmem>>, vector<32x32xbf16>
    %cst = arith.constant dense<0.000000e+00> : vector<16x32xf32>
    %4 = tpu.matmul %2, %3, %cst {dimension_numbers = #tpu.dot_dimension_numbers<[1], [0], [0], [1], [0, 0, 1, 1], [], []>} : vector<16x32xbf16>, vector<32x32xbf16>, vector<16x32xf32> -> vector<16x32xf32>
    %c0_4 = arith.constant 0 : index
    %c0_5 = arith.constant 0 : index
    %5 = vector.load %arg6[%c0_4, %c0_5] : memref<32x32xbf16, #tpu.memory_space<vmem>>, vector<32x32xbf16>
    %cst_6 = arith.constant dense<0.000000e+00> : vector<16x32xf32>
    %6 = tpu.matmul %2, %5, %cst_6 {dimension_numbers = #tpu.dot_dimension_numbers<[1], [0], [0], [1], [0, 0, 1, 1], [], []>} : vector<16x32xbf16>, vector<32x32xbf16>, vector<16x32xf32> -> vector<16x32xf32>
    %c0_7 = arith.constant 0 : index
    %c0_8 = arith.constant 0 : index
    %c0_9 = arith.constant 0 : index
    %7 = vector.load %arg2[%c0_7, %c0_8, %c0_9] : memref<1x4x16xi32, #tpu.memory_space<vmem>>, vector<1x4x16xi32>
    %8 = vector.shape_cast %7 : vector<1x4x16xi32> to vector<4x16xi32>
    %9 = tpu.iota {dimensions = array<i32: 2>} : vector<4x16x16xi32>
    %10 = vector.shape_cast %8 : vector<4x16xi32> to vector<4x16x1xi32>
    %11 = vector.broadcast %10 : vector<4x16x1xi32> to vector<4x16x16xi32>
    %12 = arith.cmpi eq, %11, %9 : vector<4x16x16xi32>
    %13 = arith.extui %12 : vector<4x16x16xi1> to vector<4x16x16xi32>
    %14 = arith.sitofp %13 : vector<4x16x16xi32> to vector<4x16x16xf32>
    %15 = arith.truncf %14 : vector<4x16x16xf32> to vector<4x16x16xbf16>
    %16 = vector.shape_cast %15 : vector<4x16x16xbf16> to vector<64x16xbf16>
    %17 = arith.truncf %6 : vector<16x32xf32> to vector<16x32xbf16>
    %cst_10 = arith.constant dense<0.000000e+00> : vector<64x32xf32>
    %18 = tpu.matmul %16, %17, %cst_10 {dimension_numbers = #tpu.dot_dimension_numbers<[1], [0], [0], [1], [0, 0, 1, 1], [], []>} : vector<64x16xbf16>, vector<16x32xbf16>, vector<64x32xf32> -> vector<64x32xf32>
    %19 = vector.shape_cast %18 : vector<64x32xf32> to vector<4x16x32xf32>
    %c0_11 = arith.constant 0 : index
    %c0_12 = arith.constant 0 : index
    %c0_13 = arith.constant 0 : index
    %20 = vector.load %arg3[%c0_11, %c0_12, %c0_13] : memref<1x4x16xf32, #tpu.memory_space<vmem>>, vector<1x4x16xf32>
    %21 = vector.shape_cast %20 : vector<1x4x16xf32> to vector<4x16xf32>
    %22 = vector.shape_cast %4 : vector<16x32xf32> to vector<1x16x32xf32>
    %23 = vector.broadcast %22 : vector<1x16x32xf32> to vector<4x16x32xf32>
    %24 = arith.addf %23, %19 : vector<4x16x32xf32>
    %25 = vector.shape_cast %21 : vector<4x16xf32> to vector<4x16x1xf32>
    %c0_14 = arith.constant 0 : index
    %c0_15 = arith.constant 0 : index
    %26 = vector.load %arg7[%c0_14, %c0_15] : memref<1x32xf32, #tpu.memory_space<vmem>>, vector<1x32xf32>
    %27 = vector.shape_cast %26 : vector<1x32xf32> to vector<1x1x32xf32>
    %28 = vector.broadcast %25 : vector<4x16x1xf32> to vector<4x16x32xf32>
    %29 = vector.broadcast %27 : vector<1x1x32xf32> to vector<4x16x32xf32>
    %30 = arith.mulf %28, %29 : vector<4x16x32xf32>
    %31 = arith.addf %24, %30 : vector<4x16x32xf32>
    %c0_16 = arith.constant 0 : index
    %c0_17 = arith.constant 0 : index
    %32 = vector.load %arg8[%c0_16, %c0_17] : memref<1x32xf32, #tpu.memory_space<vmem>>, vector<1x32xf32>
    %33 = vector.shape_cast %32 : vector<1x32xf32> to vector<1x1x32xf32>
    %34 = vector.broadcast %33 : vector<1x1x32xf32> to vector<4x16x32xf32>
    %35 = arith.addf %31, %34 : vector<4x16x32xf32>
    %36 = arith.negf %35 : vector<4x16x32xf32>
    %37 = math.exp %36 : vector<4x16x32xf32>
    %cst_18 = arith.constant 1.000000e+00 : f32
    %38 = vector.broadcast %cst_18 : f32 to vector<4x16x32xf32>
    %39 = arith.addf %38, %37 : vector<4x16x32xf32>
    %40 = arith.divf %38, %39 : vector<4x16x32xf32>
    %41 = arith.mulf %35, %40 : vector<4x16x32xf32>
    %42 = vector.shape_cast %41 : vector<4x16x32xf32> to vector<64x32xf32>
    %43 = arith.truncf %42 : vector<64x32xf32> to vector<64x32xbf16>
    %c0_19 = arith.constant 0 : index
    %c0_20 = arith.constant 0 : index
    %44 = vector.load %arg9[%c0_19, %c0_20] : memref<32x16xbf16, #tpu.memory_space<vmem>>, vector<32x16xbf16>
    %cst_21 = arith.constant dense<0.000000e+00> : vector<64x16xf32>
    %45 = tpu.matmul %43, %44, %cst_21 {dimension_numbers = #tpu.dot_dimension_numbers<[1], [0], [0], [1], [0, 0, 1, 1], [], []>} : vector<64x32xbf16>, vector<32x16xbf16>, vector<64x16xf32> -> vector<64x16xf32>
    %c0_22 = arith.constant 0 : index
    %c0_23 = arith.constant 0 : index
    %46 = vector.load %arg10[%c0_22, %c0_23] : memref<1x16xf32, #tpu.memory_space<vmem>>, vector<1x16xf32>
    %47 = vector.broadcast %46 : vector<1x16xf32> to vector<64x16xf32>
    %48 = arith.addf %45, %47 : vector<64x16xf32>
    %49 = arith.negf %48 : vector<64x16xf32>
    %50 = math.exp %49 : vector<64x16xf32>
    %cst_24 = arith.constant 1.000000e+00 : f32
    %51 = vector.broadcast %cst_24 : f32 to vector<64x16xf32>
    %52 = arith.addf %51, %50 : vector<64x16xf32>
    %53 = arith.divf %51, %52 : vector<64x16xf32>
    %54 = arith.mulf %48, %53 : vector<64x16xf32>
    %55 = vector.shape_cast %54 : vector<64x16xf32> to vector<4x16x16xf32>
    %c0_25 = arith.constant 0 : index
    %c0_26 = arith.constant 0 : index
    %c0_27 = arith.constant 0 : index
    %56 = vector.load %arg4[%c0_25, %c0_26, %c0_27] : memref<1x4x16xf32, #tpu.memory_space<vmem>>, vector<1x4x16xf32>
    %57 = vector.shape_cast %56 : vector<1x4x16xf32> to vector<4x16xf32>
    %58 = vector.shape_cast %57 : vector<4x16xf32> to vector<4x16x1xf32>
    %59 = vector.broadcast %58 : vector<4x16x1xf32> to vector<4x16x16xf32>
    %60 = arith.mulf %55, %59 : vector<4x16x16xf32>
    %cst_28 = arith.constant dense<0.000000e+00> : vector<16x16xf32>
    %61 = vector.multi_reduction <add>, %60, %cst_28 [0] : vector<4x16x16xf32> to vector<16x16xf32>
    %c0_29 = arith.constant 0 : index
    %c0_30 = arith.constant 0 : index
    %62 = vector.load %arg11[%c0_29, %c0_30] : memref<32x64xbf16, #tpu.memory_space<vmem>>, vector<32x64xbf16>
    %cst_31 = arith.constant dense<0.000000e+00> : vector<16x64xf32>
    %63 = tpu.matmul %2, %62, %cst_31 {dimension_numbers = #tpu.dot_dimension_numbers<[1], [0], [0], [1], [0, 0, 1, 1], [], []>} : vector<16x32xbf16>, vector<32x64xbf16>, vector<16x64xf32> -> vector<16x64xf32>
    %64 = arith.truncf %61 : vector<16x16xf32> to vector<16x16xbf16>
    %c0_32 = arith.constant 0 : index
    %c0_33 = arith.constant 0 : index
    %65 = vector.load %arg12[%c0_32, %c0_33] : memref<16x64xbf16, #tpu.memory_space<vmem>>, vector<16x64xbf16>
    %cst_34 = arith.constant dense<0.000000e+00> : vector<16x64xf32>
    %66 = tpu.matmul %64, %65, %cst_34 {dimension_numbers = #tpu.dot_dimension_numbers<[1], [0], [0], [1], [0, 0, 1, 1], [], []>} : vector<16x16xbf16>, vector<16x64xbf16>, vector<16x64xf32> -> vector<16x64xf32>
    %67 = arith.addf %63, %66 : vector<16x64xf32>
    %c0_35 = arith.constant 0 : index
    %c0_36 = arith.constant 0 : index
    %68 = vector.load %arg13[%c0_35, %c0_36] : memref<1x64xf32, #tpu.memory_space<vmem>>, vector<1x64xf32>
    %69 = vector.broadcast %68 : vector<1x64xf32> to vector<16x64xf32>
    %70 = arith.addf %67, %69 : vector<16x64xf32>
    %71 = arith.negf %70 : vector<16x64xf32>
    %72 = math.exp %71 : vector<16x64xf32>
    %cst_37 = arith.constant 1.000000e+00 : f32
    %73 = vector.broadcast %cst_37 : f32 to vector<16x64xf32>
    %74 = arith.addf %73, %72 : vector<16x64xf32>
    %75 = arith.divf %73, %74 : vector<16x64xf32>
    %76 = arith.mulf %70, %75 : vector<16x64xf32>
    %77 = arith.truncf %76 : vector<16x64xf32> to vector<16x64xbf16>
    %c0_38 = arith.constant 0 : index
    %c0_39 = arith.constant 0 : index
    %78 = vector.load %arg14[%c0_38, %c0_39] : memref<64x32xbf16, #tpu.memory_space<vmem>>, vector<64x32xbf16>
    %cst_40 = arith.constant dense<0.000000e+00> : vector<16x32xf32>
    %79 = tpu.matmul %77, %78, %cst_40 {dimension_numbers = #tpu.dot_dimension_numbers<[1], [0], [0], [1], [0, 0, 1, 1], [], []>} : vector<16x64xbf16>, vector<64x32xbf16>, vector<16x32xf32> -> vector<16x32xf32>
    %c0_41 = arith.constant 0 : index
    %c0_42 = arith.constant 0 : index
    %80 = vector.load %arg15[%c0_41, %c0_42] : memref<1x32xf32, #tpu.memory_space<vmem>>, vector<1x32xf32>
    %81 = vector.broadcast %80 : vector<1x32xf32> to vector<16x32xf32>
    %82 = arith.addf %79, %81 : vector<16x32xf32>
    %83 = arith.addf %82, %1 : vector<16x32xf32>
    %c0_43 = arith.constant 0 : index
    %c0_44 = arith.constant 0 : index
    %c0_45 = arith.constant 0 : index
    %84 = vector.load %arg16[%c0_43, %c0_44, %c0_45] : memref<1x16x32xf32, #tpu.memory_space<vmem>>, vector<1x16x32xf32>
    %85 = vector.shape_cast %84 : vector<1x16x32xf32> to vector<16x32xf32>
    %86 = vector.shape_cast %83 : vector<16x32xf32> to vector<1x16x32xf32>
    tpu.vector_store %arg16[%c0_43, %c0_44, %c0_45], %86 {strides = array<i32>} : memref<1x16x32xf32, #tpu.memory_space<vmem>>, vector<1x16x32xf32>,
    return
  }
  func.func @transform_0(%arg0: i32) -> (i32, i32, i32) {
    %c0_i32 = arith.constant 0 : i32
    %c0_i32_0 = arith.constant 0 : i32
    %c0_i32_1 = arith.constant 0 : i32
    return %arg0, %c0_i32, %c0_i32_0 : i32, i32, i32
  }
  func.func @transform_1(%arg0: i32) -> (i32, i32, i32) {
    %c0_i32 = arith.constant 0 : i32
    %c0_i32_0 = arith.constant 0 : i32
    %c0_i32_1 = arith.constant 0 : i32
    return %arg0, %c0_i32, %c0_i32_0 : i32, i32, i32
  }
  func.func @transform_2(%arg0: i32) -> (i32, i32, i32) {
    %c0_i32 = arith.constant 0 : i32
    %c0_i32_0 = arith.constant 0 : i32
    %c0_i32_1 = arith.constant 0 : i32
    return %arg0, %c0_i32, %c0_i32_0 : i32, i32, i32
  }
  func.func @transform_3(%arg0: i32) -> (i32, i32, i32) {
    %c0_i32 = arith.constant 0 : i32
    %c0_i32_0 = arith.constant 0 : i32
    %c0_i32_1 = arith.constant 0 : i32
    return %arg0, %c0_i32, %c0_i32_0 : i32, i32, i32
  }
  func.func @transform_4(%arg0: i32) -> (i32, i32) {
    %c0_i32 = arith.constant 0 : i32
    %c0_i32_0 = arith.constant 0 : i32
    %c0_i32_1 = arith.constant 0 : i32
    return %c0_i32, %c0_i32_0 : i32, i32
  }
  func.func @transform_5(%arg0: i32) -> (i32, i32) {
    %c0_i32 = arith.constant 0 : i32
    %c0_i32_0 = arith.constant 0 : i32
    %c0_i32_1 = arith.constant 0 : i32
    return %c0_i32, %c0_i32_0 : i32, i32
  }
  func.func @transform_6(%arg0: i32) -> (i32, i32) {
    %c0_i32 = arith.constant 0 : i32
    %c0_i32_0 = arith.constant 0 : i32
    %c0_i32_1 = arith.constant 0 : i32
    return %c0_i32, %c0_i32_0 : i32, i32
  }
  func.func @transform_7(%arg0: i32) -> (i32, i32) {
    %c0_i32 = arith.constant 0 : i32
    %c0_i32_0 = arith.constant 0 : i32
    %c0_i32_1 = arith.constant 0 : i32
    return %c0_i32, %c0_i32_0 : i32, i32
  }
  func.func @transform_8(%arg0: i32) -> (i32, i32) {
    %c0_i32 = arith.constant 0 : i32
    %c0_i32_0 = arith.constant 0 : i32
    %c0_i32_1 = arith.constant 0 : i32
    return %c0_i32, %c0_i32_0 : i32, i32
  }
  func.func @transform_9(%arg0: i32) -> (i32, i32) {
    %c0_i32 = arith.constant 0 : i32
    %c0_i32_0 = arith.constant 0 : i32
    %c0_i32_1 = arith.constant 0 : i32
    return %c0_i32, %c0_i32_0 : i32, i32
  }
  func.func @transform_10(%arg0: i32) -> (i32, i32) {
    %c0_i32 = arith.constant 0 : i32
    %c0_i32_0 = arith.constant 0 : i32
    %c0_i32_1 = arith.constant 0 : i32
    return %c0_i32, %c0_i32_0 : i32, i32
  }
  func.func @transform_11(%arg0: i32) -> (i32, i32) {
    %c0_i32 = arith.constant 0 : i32
    %c0_i32_0 = arith.constant 0 : i32
    %c0_i32_1 = arith.constant 0 : i32
    return %c0_i32, %c0_i32_0 : i32, i32
  }
  func.func @transform_12(%arg0: i32) -> (i32, i32) {
    %c0_i32 = arith.constant 0 : i32
    %c0_i32_0 = arith.constant 0 : i32
    %c0_i32_1 = arith.constant 0 : i32
    return %c0_i32, %c0_i32_0 : i32, i32
  }
  func.func @transform_13(%arg0: i32) -> (i32, i32) {
    %c0_i32 = arith.constant 0 : i32
    %c0_i32_0 = arith.constant 0 : i32
    %c0_i32_1 = arith.constant 0 : i32
    return %c0_i32, %c0_i32_0 : i32, i32
  }
  func.func @transform_14(%arg0: i32) -> (i32, i32) {
    %c0_i32 = arith.constant 0 : i32
    %c0_i32_0 = arith.constant 0 : i32
    %c0_i32_1 = arith.constant 0 : i32
    return %c0_i32, %c0_i32_0 : i32, i32
  }
  func.func @transform_15(%arg0: i32) -> (i32, i32, i32) {
    %c0_i32 = arith.constant 0 : i32
    %c0_i32_0 = arith.constant 0 : i32
    %c0_i32_1 = arith.constant 0 : i32
    return %arg0, %c0_i32, %c0_i32_0 : i32, i32, i32
  }
}

</mosaic_0001>

<llo_original>
// kernel: tpu_custom_call.1
$region0: #{tpu_custom_call.1}
  #allocation0 [shape = 'u32[]', space=smem, size = 0x4, offset = 0x4, fixed_abs, tag = 'smem constant byte address 0x4 - core index']
  #allocation1 [shape = 'u32[144,128]{1,0:T(1,128)}', space=vmem, size = 0x12000, scoped, tag = 'internal scratch']
  %s0 = inlined_call_operand.vmem [shape: f32[2,16,32], index: 0, kind: input, shape index: {}]
  %s1 = inlined_call_operand.hbm [shape: s32[2,4,16], index: 1, kind: input, shape index: {}]
  %s2 = inlined_call_operand.hbm [shape: f32[2,4,16], index: 2, kind: input, shape index: {}]
  %s3 = inlined_call_operand.hbm [shape: f32[2,4,16], index: 3, kind: input, shape index: {}]
  %s4 = inlined_call_operand.vmem [shape: bf16[32,32], index: 4, kind: input, shape index: {}]
  %s5 = inlined_call_operand.vmem [shape: bf16[32,32], index: 5, kind: input, shape index: {}]
  %s6 = inlined_call_operand.hbm [shape: f32[1,32], index: 6, kind: input, shape index: {}]
  %s7 = inlined_call_operand.hbm [shape: f32[1,32], index: 7, kind: input, shape index: {}]
  %s8 = inlined_call_operand.vmem [shape: bf16[32,16], index: 8, kind: input, shape index: {}]
  %s9 = inlined_call_operand.hbm [shape: f32[1,16], index: 9, kind: input, shape index: {}]
  %s10 = inlined_call_operand.hbm [shape: bf16[32,64], index: 10, kind: input, shape index: {}]
  %s11 = inlined_call_operand.vmem [shape: bf16[16,64], index: 11, kind: input, shape index: {}]
  %s12 = inlined_call_operand.vmem [shape: f32[1,64], index: 12, kind: input, shape index: {}]
  %s13 = inlined_call_operand.vmem [shape: bf16[64,32], index: 13, kind: input, shape index: {}]
  %s14 = inlined_call_operand.vmem [shape: f32[1,32], index: 14, kind: input, shape index: {}]
  %s15 = inlined_call_operand.hbm [shape: f32[2,16,32], index: 15, kind: output, shape index: {}]
  %s16 = sld [smem:[#allocation0]]
  $region121: #{tpu_custom_call.1} parent=0
    _
  %s18 = ssub.s32 1, %s16
  %s19 = scalar_select 0, %s18, %s16
  $region1: #{tpu_custom_call.1} parent=0
    #allocation2 [shape = 'u8[4096]{0}', space=vmem, size = 0x1000, scoped, tag = 'input window, operand 1']
    #allocation3 [shape = 's32[2]{0}', space=sflag, size = 0x8, scoped, tag = 'scoped memory for tpu_custom_call.1']
    #allocation4 [shape = 's32[2]{0}', space=sflag, size = 0x8, scoped, tag = 'scoped memory for tpu_custom_call.1']
    #allocation5 [shape = 'u8[4096]{0}', space=vmem, size = 0x1000, scoped, tag = 'input window, operand 2']
    #allocation6 [shape = 's32[2]{0}', space=sflag, size = 0x8, scoped, tag = 'scoped memory for tpu_custom_call.1']
    #allocation7 [shape = 'u8[4096]{0}', space=vmem, size = 0x1000, scoped, tag = 'input window, operand 3']
    #allocation8 [shape = 'u8[512]{0}', space=vmem, size = 0x400, scoped, tag = 'input window, operand 6, single buffered']
    #allocation9 [shape = 's32[1]{0}', space=sflag, size = 0x4, scoped, tag = 'scoped memory for tpu_custom_call.1']
    #allocation10 [shape = 'u8[512]{0}', space=vmem, size = 0x400, scoped, tag = 'input window, operand 7, single buffered']
    #allocation11 [shape = 'u8[512]{0}', space=vmem, size = 0x400, scoped, tag = 'input window, operand 9, single buffered']
    #allocation12 [shape = 's32[1]{0}', space=sflag, size = 0x4, scoped, tag = 'scoped memory for tpu_custom_call.1']
    #allocation13 [shape = 'u8[8192]{0}', space=vmem, size = 0x2000, scoped, tag = 'input window, operand 10, single buffered']
    #allocation14 [shape = 'u8[16384]{0}', space=vmem, size = 0x4000, scoped, tag = 'output window, operand 0']
    %20 = vsyncpa [#allocation3], 0
    %s21 = scalar_lea.sflag [#allocation3], 1
    %22 = vsyncpa %s21, 0
    %23 = vsyncpa [#allocation6], 0
    %s24 = scalar_lea.sflag [#allocation6], 1
    %25 = vsyncpa %s24, 0
    %26 = vsyncpa [#allocation9], 0
    %27 = vsyncpa [#allocation12], 0
    %28 = vsyncpa [#allocation4], 0
    %s29 = scalar_lea.sflag [#allocation4], 1
    %30 = vsyncpa %s29, 0
    loop: start=0, step=1, limit=4
    $region2: #{tpu_custom_call.1} parent=1 // loop_pre_header
      _
    $region3: #{tpu_custom_call.1} parent=1 // loop_header
      %s32 = sphi 0, %s36
      %p33 = scmp.ge.s32.totalorder %s32, 4
      %s42 = sphi 0, %s44
      %s45 = sphi 0, %s42
      %s46 = sphi 0, %s45
      %s62 = sphi 0, %s46
      %s68 = sphi 0, %s70
      %s71 = sphi 0, %s68
      %s72 = sphi 0, %s71
      %s88 = sphi 0, %s72
      %s94 = sphi 0, %s96
      %s97 = sphi 0, %s94
      %s98 = sphi 0, %s97
      %s114 = sphi 0, %s98
      %s120 = sphi 0, %s122
      %s123 = sphi 0, %s120
      %s124 = sphi 0, %s123
      %s140 = sphi 0, %s124
      %s144 = sphi 0, %s144
      %s146 = sphi 0, %s144
      %s147 = sphi 0, %s146
      %s161 = sphi 0, %s147
      %s165 = sphi 0, %s165
      %s167 = sphi 0, %s165
      %s168 = sphi 0, %s167
      %s182 = sphi 0, %s168
      %s186 = sphi 0, %s186
      %s188 = sphi 0, %s186
      %s189 = sphi 0, %s188
      %s203 = sphi 0, %s189
      %s207 = sphi 0, %s207
      %s209 = sphi 0, %s207
      %s210 = sphi 0, %s209
      %s224 = sphi 0, %s210
      %s228 = sphi 0, %s228
      %s230 = sphi 0, %s228
      %s231 = sphi 0, %s230
      %s245 = sphi 0, %s231
      %s249 = sphi 0, %s249
      %s251 = sphi 0, %s249
      %s252 = sphi 0, %s251
      %s266 = sphi 0, %s252
      %s270 = sphi 0, %s270
      %s272 = sphi 0, %s270
      %s273 = sphi 0, %s272
      %s287 = sphi 0, %s273
      %s291 = sphi 0, %s291
      %s293 = sphi 0, %s291
      %s294 = sphi 0, %s293
      %s308 = sphi 0, %s294
      %s312 = sphi 0, %s312
      %s314 = sphi 0, %s312
      %s315 = sphi 0, %s314
      %s329 = sphi 0, %s315
      %s333 = sphi 0, %s333
      %s335 = sphi 0, %s333
      %s336 = sphi 0, %s335
      %s350 = sphi 0, %s336
      %s354 = sphi 0, %s354
      %s356 = sphi 0, %s354
      %s357 = sphi 0, %s356
      %s371 = sphi 0, %s357
      %s377 = sphi 0, %s379
      %s380 = sphi 0, %s377
      %s381 = sphi 0, %s380
      %s397 = sphi 0, %s381
    $region4: #{tpu_custom_call.1} parent=1 // loop_header_branch
      %35 = sbr.rel (%p33) target = $region8
    $region5: #{tpu_custom_call.1} parent=1 // loop_body
      %s37 = ssub.s32 %s32, 1
      %s38 = ssub.s32 %s32, 2
      %s39 = sadd.s32 %s32, 1
      %s40 = ssub.s32 %s32, %s39
      %p41 = scmp.eq.s32.totalorder %s40, 0
      %s43 = sadd.s32 %s42, 1
      %s44 = scalar_select %p41, %s42, %s43
      %p47 = pneg %p41
      %p48 = scmp.eq.s32.totalorder %s32, 1
      %p49 = por %p47, %p48
      %p50 = scmp.ne.s32.totalorder %s42, %s45
      %p51 = scmp.eq.s32.totalorder %s32, 0
      %p52 = por %p50, %p51
      %p53 = scmp.ne.s32.totalorder %s42, %s45
      %p54 = scmp.eq.s32.totalorder %s37, 1
      %p55 = por %p53, %p54
      %p56 = scmp.ne.s32.totalorder %s45, %s46
      %p57 = scmp.eq.s32.totalorder %s37, 0
      %p58 = por %p56, %p57
      %p59 = scmp.ne.s32.totalorder %s45, %s46
      %p60 = scmp.eq.s32.totalorder %s38, 1
      %p61 = por %p59, %p60
      %p63 = scmp.ne.s32.totalorder %s46, %s62
      %p64 = scmp.eq.s32.totalorder %s38, 0
      %p65 = por %p63, %p64
      %s66 = ssub.s32 %s32, %s39
      %p67 = scmp.eq.s32.totalorder %s66, 0
      %s69 = sadd.s32 %s68, 1
      %s70 = scalar_select %p67, %s68, %s69
      %p73 = pneg %p67
      %p74 = scmp.eq.s32.totalorder %s32, 1
      %p75 = por %p73, %p74
      %p76 = scmp.ne.s32.totalorder %s68, %s71
      %p77 = scmp.eq.s32.totalorder %s32, 0
      %p78 = por %p76, %p77
      %p79 = scmp.ne.s32.totalorder %s68, %s71
      %p80 = scmp.eq.s32.totalorder %s37, 1
      %p81 = por %p79, %p80
      %p82 = scmp.ne.s32.totalorder %s71, %s72
      %p83 = scmp.eq.s32.totalorder %s37, 0
      %p84 = por %p82, %p83
      %p85 = scmp.ne.s32.totalorder %s71, %s72
      %p86 = scmp.eq.s32.totalorder %s38, 1
      %p87 = por %p85, %p86
      %p89 = scmp.ne.s32.totalorder %s72, %s88
      %p90 = scmp.eq.s32.totalorder %s38, 0
      %p91 = por %p89, %p90
      %s92 = ssub.s32 %s32, %s39
      %p93 = scmp.eq.s32.totalorder %s92, 0
      %s95 = sadd.s32 %s94, 1
      %s96 = scalar_select %p93, %s94, %s95
      %p99 = pneg %p93
      %p100 = scmp.eq.s32.totalorder %s32, 1
      %p101 = por %p99, %p100
      %p102 = scmp.ne.s32.totalorder %s94, %s97
      %p103 = scmp.eq.s32.totalorder %s32, 0
      %p104 = por %p102, %p103
      %p105 = scmp.ne.s32.totalorder %s94, %s97
      %p106 = scmp.eq.s32.totalorder %s37, 1
      %p107 = por %p105, %p106
      %p108 = scmp.ne.s32.totalorder %s97, %s98
      %p109 = scmp.eq.s32.totalorder %s37, 0
      %p110 = por %p108, %p109
      %p111 = scmp.ne.s32.totalorder %s97, %s98
      %p112 = scmp.eq.s32.totalorder %s38, 1
      %p113 = por %p111, %p112
      %p115 = scmp.ne.s32.totalorder %s98, %s114
      %p116 = scmp.eq.s32.totalorder %s38, 0
      %p117 = por %p115, %p116
      %s118 = ssub.s32 %s32, %s39
      %p119 = scmp.eq.s32.totalorder %s118, 0
      %s121 = sadd.s32 %s120, 1
      %s122 = scalar_select %p119, %s120, %s121
      %p125 = pneg %p119
      %p126 = scmp.eq.s32.totalorder %s32, 1
      %p127 = por %p125, %p126
      %p128 = scmp.ne.s32.totalorder %s120, %s123
      %p129 = scmp.eq.s32.totalorder %s32, 0
      %p130 = por %p128, %p129
      %p131 = scmp.ne.s32.totalorder %s120, %s123
      %p132 = scmp.eq.s32.totalorder %s37, 1
      %p133 = por %p131, %p132
      %p134 = scmp.ne.s32.totalorder %s123, %s124
      %p135 = scmp.eq.s32.totalorder %s37, 0
      %p136 = por %p134, %p135
      %p137 = scmp.ne.s32.totalorder %s123, %s124
      %p138 = scmp.eq.s32.totalorder %s38, 1
      %p139 = por %p137, %p138
      %p141 = scmp.ne.s32.totalorder %s124, %s140
      %p142 = scmp.eq.s32.totalorder %s38, 0
      %p143 = por %p141, %p142
      %s145 = sadd.s32 %s144, 1
      %p148 = scmp.eq.s32.totalorder %s32, 1
      %p149 = scmp.ne.s32.totalorder %s144, %s146
      %p150 = scmp.eq.s32.totalorder %s32, 0
      %p151 = por %p149, %p150
      %p152 = scmp.ne.s32.totalorder %s144, %s146
      %p153 = scmp.eq.s32.totalorder %s37, 1
      %p154 = por %p152, %p153
      %p155 = scmp.ne.s32.totalorder %s146, %s147
      %p156 = scmp.eq.s32.totalorder %s37, 0
      %p157 = por %p155, %p156
      %p158 = scmp.ne.s32.totalorder %s146, %s147
      %p159 = scmp.eq.s32.totalorder %s38, 1
      %p160 = por %p158, %p159
      %p162 = scmp.ne.s32.totalorder %s147, %s161
      %p163 = scmp.eq.s32.totalorder %s38, 0
      %p164 = por %p162, %p163
      %s166 = sadd.s32 %s165, 1
      %p169 = scmp.eq.s32.totalorder %s32, 1
      %p170 = scmp.ne.s32.totalorder %s165, %s167
      %p171 = scmp.eq.s32.totalorder %s32, 0
      %p172 = por %p170, %p171
      %p173 = scmp.ne.s32.totalorder %s165, %s167
      %p174 = scmp.eq.s32.totalorder %s37, 1
      %p175 = por %p173, %p174
      %p176 = scmp.ne.s32.totalorder %s167, %s168
      %p177 = scmp.eq.s32.totalorder %s37, 0
      %p178 = por %p176, %p177
      %p179 = scmp.ne.s32.totalorder %s167, %s168
      %p180 = scmp.eq.s32.totalorder %s38, 1
      %p181 = por %p179, %p180
      %p183 = scmp.ne.s32.totalorder %s168, %s182
      %p184 = scmp.eq.s32.totalorder %s38, 0
      %p185 = por %p183, %p184
      %s187 = sadd.s32 %s186, 1
      %p190 = scmp.eq.s32.totalorder %s32, 1
      %p191 = scmp.ne.s32.totalorder %s186, %s188
      %p192 = scmp.eq.s32.totalorder %s32, 0
      %p193 = por %p191, %p192
      %p194 = scmp.ne.s32.totalorder %s186, %s188
      %p195 = scmp.eq.s32.totalorder %s37, 1
      %p196 = por %p194, %p195
      %p197 = scmp.ne.s32.totalorder %s188, %s189
      %p198 = scmp.eq.s32.totalorder %s37, 0
      %p199 = por %p197, %p198
      %p200 = scmp.ne.s32.totalorder %s188, %s189
      %p201 = scmp.eq.s32.totalorder %s38, 1
      %p202 = por %p200, %p201
      %p204 = scmp.ne.s32.totalorder %s189, %s203
      %p205 = scmp.eq.s32.totalorder %s38, 0
      %p206 = por %p204, %p205
      %s208 = sadd.s32 %s207, 1
      %p211 = scmp.eq.s32.totalorder %s32, 1
      %p212 = scmp.ne.s32.totalorder %s207, %s209
      %p213 = scmp.eq.s32.totalorder %s32, 0
      %p214 = por %p212, %p213
      %p215 = scmp.ne.s32.totalorder %s207, %s209
      %p216 = scmp.eq.s32.totalorder %s37, 1
      %p217 = por %p215, %p216
      %p218 = scmp.ne.s32.totalorder %s209, %s210
      %p219 = scmp.eq.s32.totalorder %s37, 0
      %p220 = por %p218, %p219
      %p221 = scmp.ne.s32.totalorder %s209, %s210
      %p222 = scmp.eq.s32.totalorder %s38, 1
      %p223 = por %p221, %p222
      %p225 = scmp.ne.s32.totalorder %s210, %s224
      %p226 = scmp.eq.s32.totalorder %s38, 0
      %p227 = por %p225, %p226
      %s229 = sadd.s32 %s228, 1
      %p232 = scmp.eq.s32.totalorder %s32, 1
      %p233 = scmp.ne.s32.totalorder %s228, %s230
      %p234 = scmp.eq.s32.totalorder %s32, 0
      %p235 = por %p233, %p234
      %p236 = scmp.ne.s32.totalorder %s228, %s230
      %p237 = scmp.eq.s32.totalorder %s37, 1
      %p238 = por %p236, %p237
      %p239 = scmp.ne.s32.totalorder %s230, %s231
      %p240 = scmp.eq.s32.totalorder %s37, 0
      %p241 = por %p239, %p240
      %p242 = scmp.ne.s32.totalorder %s230, %s231
      %p243 = scmp.eq.s32.totalorder %s38, 1
      %p244 = por %p242, %p243
      %p246 = scmp.ne.s32.totalorder %s231, %s245
      %p247 = scmp.eq.s32.totalorder %s38, 0
      %p248 = por %p246, %p247
      %s250 = sadd.s32 %s249, 1
      %p253 = scmp.eq.s32.totalorder %s32, 1
      %p254 = scmp.ne.s32.totalorder %s249, %s251
      %p255 = scmp.eq.s32.totalorder %s32, 0
      %p256 = por %p254, %p255
      %p257 = scmp.ne.s32.totalorder %s249, %s251
      %p258 = scmp.eq.s32.totalorder %s37, 1
      %p259 = por %p257, %p258
      %p260 = scmp.ne.s32.totalorder %s251, %s252
      %p261 = scmp.eq.s32.totalorder %s37, 0
      %p262 = por %p260, %p261
      %p263 = scmp.ne.s32.totalorder %s251, %s252
      %p264 = scmp.eq.s32.totalorder %s38, 1
      %p265 = por %p263, %p264
      %p267 = scmp.ne.s32.totalorder %s252, %s266
      %p268 = scmp.eq.s32.totalorder %s38, 0
      %p269 = por %p267, %p268
      %s271 = sadd.s32 %s270, 1
      %p274 = scmp.eq.s32.totalorder %s32, 1
      %p275 = scmp.ne.s32.totalorder %s270, %s272
      %p276 = scmp.eq.s32.totalorder %s32, 0
      %p277 = por %p275, %p276
      %p278 = scmp.ne.s32.totalorder %s270, %s272
      %p279 = scmp.eq.s32.totalorder %s37, 1
      %p280 = por %p278, %p279
      %p281 = scmp.ne.s32.totalorder %s272, %s273
      %p282 = scmp.eq.s32.totalorder %s37, 0
      %p283 = por %p281, %p282
      %p284 = scmp.ne.s32.totalorder %s272, %s273
      %p285 = scmp.eq.s32.totalorder %s38, 1
      %p286 = por %p284, %p285
      %p288 = scmp.ne.s32.totalorder %s273, %s287
      %p289 = scmp.eq.s32.totalorder %s38, 0
      %p290 = por %p288, %p289
      %s292 = sadd.s32 %s291, 1
      %p295 = scmp.eq.s32.totalorder %s32, 1
      %p296 = scmp.ne.s32.totalorder %s291, %s293
      %p297 = scmp.eq.s32.totalorder %s32, 0
      %p298 = por %p296, %p297
      %p299 = scmp.ne.s32.totalorder %s291, %s293
      %p300 = scmp.eq.s32.totalorder %s37, 1
      %p301 = por %p299, %p300
      %p302 = scmp.ne.s32.totalorder %s293, %s294
      %p303 = scmp.eq.s32.totalorder %s37, 0
      %p304 = por %p302, %p303
      %p305 = scmp.ne.s32.totalorder %s293, %s294
      %p306 = scmp.eq.s32.totalorder %s38, 1
      %p307 = por %p305, %p306
      %p309 = scmp.ne.s32.totalorder %s294, %s308
      %p310 = scmp.eq.s32.totalorder %s38, 0
      %p311 = por %p309, %p310
      %s313 = sadd.s32 %s312, 1
      %p316 = scmp.eq.s32.totalorder %s32, 1
      %p317 = scmp.ne.s32.totalorder %s312, %s314
      %p318 = scmp.eq.s32.totalorder %s32, 0
      %p319 = por %p317, %p318
      %p320 = scmp.ne.s32.totalorder %s312, %s314
      %p321 = scmp.eq.s32.totalorder %s37, 1
      %p322 = por %p320, %p321
      %p323 = scmp.ne.s32.totalorder %s314, %s315
      %p324 = scmp.eq.s32.totalorder %s37, 0
      %p325 = por %p323, %p324
      %p326 = scmp.ne.s32.totalorder %s314, %s315
      %p327 = scmp.eq.s32.totalorder %s38, 1
      %p328 = por %p326, %p327
      %p330 = scmp.ne.s32.totalorder %s315, %s329
      %p331 = scmp.eq.s32.totalorder %s38, 0
      %p332 = por %p330, %p331
      %s334 = sadd.s32 %s333, 1
      %p337 = scmp.eq.s32.totalorder %s32, 1
      %p338 = scmp.ne.s32.totalorder %s333, %s335
      %p339 = scmp.eq.s32.totalorder %s32, 0
      %p340 = por %p338, %p339
      %p341 = scmp.ne.s32.totalorder %s333, %s335
      %p342 = scmp.eq.s32.totalorder %s37, 1
      %p343 = por %p341, %p342
      %p344 = scmp.ne.s32.totalorder %s335, %s336
      %p345 = scmp.eq.s32.totalorder %s37, 0
      %p346 = por %p344, %p345
      %p347 = scmp.ne.s32.totalorder %s335, %s336
      %p348 = scmp.eq.s32.totalorder %s38, 1
      %p349 = por %p347, %p348
      %p351 = scmp.ne.s32.totalorder %s336, %s350
      %p352 = scmp.eq.s32.totalorder %s38, 0
      %p353 = por %p351, %p352
      %s355 = sadd.s32 %s354, 1
      %p358 = scmp.eq.s32.totalorder %s32, 1
      %p359 = scmp.ne.s32.totalorder %s354, %s356
      %p360 = scmp.eq.s32.totalorder %s32, 0
      %p361 = por %p359, %p360
      %p362 = scmp.ne.s32.totalorder %s354, %s356
      %p363 = scmp.eq.s32.totalorder %s37, 1
      %p364 = por %p362, %p363
      %p365 = scmp.ne.s32.totalorder %s356, %s357
      %p366 = scmp.eq.s32.totalorder %s37, 0
      %p367 = por %p365, %p366
      %p368 = scmp.ne.s32.totalorder %s356, %s357
      %p369 = scmp.eq.s32.totalorder %s38, 1
      %p370 = por %p368, %p369
      %p372 = scmp.ne.s32.totalorder %s357, %s371
      %p373 = scmp.eq.s32.totalorder %s38, 0
      %p374 = por %p372, %p373
      %s375 = ssub.s32 %s32, %s39
      %p376 = scmp.eq.s32.totalorder %s375, 0
      %s378 = sadd.s32 %s377, 1
      %s379 = scalar_select %p376, %s377, %s378
      %p382 = pneg %p376
      %p383 = scmp.eq.s32.totalorder %s32, 1
      %p384 = por %p382, %p383
      %p385 = scmp.ne.s32.totalorder %s377, %s380
      %p386 = scmp.eq.s32.totalorder %s32, 0
      %p387 = por %p385, %p386
      %p388 = scmp.ne.s32.totalorder %s377, %s380
      %p389 = scmp.eq.s32.totalorder %s37, 1
      %p390 = por %p388, %p389
      %p391 = scmp.ne.s32.totalorder %s380, %s381
      %p392 = scmp.eq.s32.totalorder %s37, 0
      %p393 = por %p391, %p392
      %p394 = scmp.ne.s32.totalorder %s380, %s381
      %p395 = scmp.eq.s32.totalorder %s38, 1
      %p396 = por %p394, %p395
      %p398 = scmp.ne.s32.totalorder %s381, %s397
      %p399 = scmp.eq.s32.totalorder %s38, 0
      %p400 = por %p398, %p399
      %p401 = scmp.le.s32.totalorder 1, %s32
      %p402 = scmp.lt.s32.totalorder %s32, 3
      %p403 = pnand %p401, %p402
      %p404 = pneg %p403
      // Predicated region
      $region9: #{tpu_custom_call.1} parent=5 // pred_check
        _
      $region10: #{tpu_custom_call.1} parent=5 // pred_check_branch
        %406 = sbr.rel (%p403) target = $region12
      $region11: #{tpu_custom_call.1} parent=5 // pred_region
        %s407 = ssub.s32 %s32, 1
        // Predicated region
        $region13: #{tpu_custom_call.1} parent=11 // pred_check
          %p408 = pneg %p157
        $region14: #{tpu_custom_call.1} parent=11 // pred_check_branch
          %410 = sbr.rel (%p408) target = $region16
        $region15: #{tpu_custom_call.1} parent=11 // pred_region
          _
        $region16: #{tpu_custom_call.1} parent=11 // pred_fallthru
          _
        // Predicated region
        $region17: #{tpu_custom_call.1} parent=11 // pred_check
          %p411 = pneg %p178
        $region18: #{tpu_custom_call.1} parent=11 // pred_check_branch
          %413 = sbr.rel (%p411) target = $region20
        $region19: #{tpu_custom_call.1} parent=11 // pred_region
          _
        $region20: #{tpu_custom_call.1} parent=11 // pred_fallthru
          _
        // Predicated region
        $region21: #{tpu_custom_call.1} parent=11 // pred_check
          %p414 = pneg %p199
        $region22: #{tpu_custom_call.1} parent=11 // pred_check_branch
          %416 = sbr.rel (%p414) target = $region24
        $region23: #{tpu_custom_call.1} parent=11 // pred_region
          %s418 = ssub.s32 16, 16
          %419 = vsyncadd [#allocation9], %s418
          %s421 = sshll.u32 [#allocation8], 4
          %s422 = int_to_ptr.vmem [resolvable:$true] %s421
          %424 = dma.hbm_to_vmem [thread:$0]  %s6, 16, %s422, [#allocation9]
        $region24: #{tpu_custom_call.1} parent=11 // pred_fallthru
          _
        // Predicated region
        $region25: #{tpu_custom_call.1} parent=11 // pred_check
          %p425 = pneg %p220
        $region26: #{tpu_custom_call.1} parent=11 // pred_check_branch
          %427 = sbr.rel (%p425) target = $region28
        $region27: #{tpu_custom_call.1} parent=11 // pred_region
          %s429 = ssub.s32 16, 16
          %430 = vsyncadd [#allocation9], %s429
          %s432 = sshll.u32 [#allocation10], 4
          %s433 = int_to_ptr.vmem [resolvable:$true] %s432
          %435 = dma.hbm_to_vmem [thread:$0]  %s7, 16, %s433, [#allocation9]
        $region28: #{tpu_custom_call.1} parent=11 // pred_fallthru
          _
        // Predicated region
        $region29: #{tpu_custom_call.1} parent=11 // pred_check
          %p436 = pneg %p241
        $region30: #{tpu_custom_call.1} parent=11 // pred_check_branch
          %438 = sbr.rel (%p436) target = $region32
        $region31: #{tpu_custom_call.1} parent=11 // pred_region
          _
        $region32: #{tpu_custom_call.1} parent=11 // pred_fallthru
          _
        // Predicated region
        $region33: #{tpu_custom_call.1} parent=11 // pred_check
          %p439 = pneg %p262
        $region34: #{tpu_custom_call.1} parent=11 // pred_check_branch
          %441 = sbr.rel (%p439) target = $region36
        $region35: #{tpu_custom_call.1} parent=11 // pred_region
          %s443 = ssub.s32 16, 16
          %444 = vsyncadd [#allocation12], %s443
          %s446 = sshll.u32 [#allocation11], 4
          %s447 = int_to_ptr.vmem [resolvable:$true] %s446
          %449 = dma.hbm_to_vmem [thread:$0]  %s9, 16, %s447, [#allocation12]
        $region36: #{tpu_custom_call.1} parent=11 // pred_fallthru
          _
        // Predicated region
        $region37: #{tpu_custom_call.1} parent=11 // pred_check
          %p450 = pneg %p283
        $region38: #{tpu_custom_call.1} parent=11 // pred_check_branch
          %452 = sbr.rel (%p450) target = $region40
        $region39: #{tpu_custom_call.1} parent=11 // pred_region
          %s454 = ssub.s32 256, 256
          %455 = vsyncadd [#allocation12], %s454
          %s456 = sshll.u32 [#allocation13], 4
          %s457 = int_to_ptr.vmem [resolvable:$true] %s456
          %462 = dma.hbm_to_vmem [thread:$0]  %s10, 256, %s457, [#allocation12], 64, 64, 4
        $region40: #{tpu_custom_call.1} parent=11 // pred_fallthru
          _
        // Predicated region
        $region41: #{tpu_custom_call.1} parent=11 // pred_check
          %p463 = pneg %p304
        $region42: #{tpu_custom_call.1} parent=11 // pred_check_branch
          %465 = sbr.rel (%p463) target = $region44
        $region43: #{tpu_custom_call.1} parent=11 // pred_region
          _
        $region44: #{tpu_custom_call.1} parent=11 // pred_fallthru
          _
        // Predicated region
        $region45: #{tpu_custom_call.1} parent=11 // pred_check
          %p466 = pneg %p325
        $region46: #{tpu_custom_call.1} parent=11 // pred_check_branch
          %468 = sbr.rel (%p466) target = $region48
        $region47: #{tpu_custom_call.1} parent=11 // pred_region
          _
        $region48: #{tpu_custom_call.1} parent=11 // pred_fallthru
          _
        // Predicated region
        $region49: #{tpu_custom_call.1} parent=11 // pred_check
          %p469 = pneg %p346
        $region50: #{tpu_custom_call.1} parent=11 // pred_check_branch
          %471 = sbr.rel (%p469) target = $region52
        $region51: #{tpu_custom_call.1} parent=11 // pred_region
          _
        $region52: #{tpu_custom_call.1} parent=11 // pred_fallthru
          _
        // Predicated region
        $region53: #{tpu_custom_call.1} parent=11 // pred_check
          %p472 = pneg %p367
        $region54: #{tpu_custom_call.1} parent=11 // pred_check_branch
          %474 = sbr.rel (%p472) target = $region56
        $region55: #{tpu_custom_call.1} parent=11 // pred_region
          _
        $region56: #{tpu_custom_call.1} parent=11 // pred_fallthru
          _
      $region12: #{tpu_custom_call.1} parent=5 // pred_fallthru
        _
      %p475 = scmp.lt.s32.totalorder %s32, 2
      // Predicated region
      $region57: #{tpu_custom_call.1} parent=5 // pred_check
        %p476 = pneg %p475
      $region58: #{tpu_custom_call.1} parent=5 // pred_check_branch
        %478 = sbr.rel (%p476) target = $region60
      $region59: #{tpu_custom_call.1} parent=5 // pred_region
        // Predicated region
        $region61: #{tpu_custom_call.1} parent=59 // pred_check
          %p479 = pneg %p52
        $region62: #{tpu_custom_call.1} parent=59 // pred_check_branch
          %481 = sbr.rel (%p479) target = $region64
        $region63: #{tpu_custom_call.1} parent=59 // pred_region
          %p482 = scmp.lt.s32.totalorder %s32, 1
          %s483 = scalar_select %p482, %s32, 1
          %s484 = smul.addr %s483, 2
          %s485 = smul.addr %s484, 8
          %s486 = scalar_lea.vmem %s0, %s485
        $region64: #{tpu_custom_call.1} parent=59 // pred_fallthru
          _
        // Predicated region
        $region65: #{tpu_custom_call.1} parent=59 // pred_check
          %p487 = pneg %p78
        $region66: #{tpu_custom_call.1} parent=59 // pred_check_branch
          %489 = sbr.rel (%p487) target = $region68
        $region67: #{tpu_custom_call.1} parent=59 // pred_region
          %s490 = sand.u32 %s68, 1
          %s491 = scalar_lea.sflag [#allocation3], %s490
          %s492 = sand.u32 %s68, 1
          %s493 = smul.addr %s492, 4
          %s494 = scalar_lea.vmem [#allocation2], %s493
          %s496 = ssub.s32 64, 64
          %497 = vsyncadd %s491, %s496
          %s498 = smul.addr %s32, 64
          %s499 = scalar_lea.hbm %s1, %s498
          %s501 = sshll.u32 %s494, 4
          %s502 = int_to_ptr.vmem [resolvable:$true] %s501
          %504 = dma.hbm_to_vmem [thread:$0]  %s499, 64, %s502, %s491
        $region68: #{tpu_custom_call.1} parent=59 // pred_fallthru
          _
        // Predicated region
        $region69: #{tpu_custom_call.1} parent=59 // pred_check
          %p505 = pneg %p104
        $region70: #{tpu_custom_call.1} parent=59 // pred_check_branch
          %507 = sbr.rel (%p505) target = $region72
        $region71: #{tpu_custom_call.1} parent=59 // pred_region
          %s508 = sand.u32 %s32, 1
          %s509 = scalar_lea.sflag [#allocation6], %s508
          %s510 = sand.u32 %s94, 1
          %s511 = smul.addr %s510, 4
          %s512 = scalar_lea.vmem [#allocation5], %s511
          %s514 = ssub.s32 64, 64
          %515 = vsyncadd %s509, %s514
          %s516 = smul.addr %s32, 64
          %s517 = scalar_lea.hbm %s2, %s516
          %s519 = sshll.u32 %s512, 4
          %s520 = int_to_ptr.vmem [resolvable:$true] %s519
          %522 = dma.hbm_to_vmem [thread:$0]  %s517, 64, %s520, %s509
        $region72: #{tpu_custom_call.1} parent=59 // pred_fallthru
          _
        // Predicated region
        $region73: #{tpu_custom_call.1} parent=59 // pred_check
          %p523 = pneg %p130
        $region74: #{tpu_custom_call.1} parent=59 // pred_check_branch
          %525 = sbr.rel (%p523) target = $region76
        $region75: #{tpu_custom_call.1} parent=59 // pred_region
          %s526 = sand.u32 %s32, 1
          %s527 = scalar_lea.sflag [#allocation6], %s526
          %s528 = sand.u32 %s120, 1
          %s529 = smul.addr %s528, 4
          %s530 = scalar_lea.vmem [#allocation7], %s529
          %s532 = ssub.s32 64, 64
          %533 = vsyncadd %s527, %s532
          %s534 = smul.addr %s32, 64
          %s535 = scalar_lea.hbm %s3, %s534
          %s537 = sshll.u32 %s530, 4
          %s538 = int_to_ptr.vmem [resolvable:$true] %s537
          %540 = dma.hbm_to_vmem [thread:$0]  %s535, 64, %s538, %s527
        $region76: #{tpu_custom_call.1} parent=59 // pred_fallthru
          _
      $region60: #{tpu_custom_call.1} parent=5 // pred_fallthru
        _
      %p541 = scmp.le.s32.totalorder 1, %s32
      %p542 = scmp.lt.s32.totalorder %s32, 3
      %p543 = pnand %p541, %p542
      %p544 = pneg %p543
      // Predicated region
      $region77: #{tpu_custom_call.1} parent=5 // pred_check
        _
      $region78: #{tpu_custom_call.1} parent=5 // pred_check_branch
        %546 = sbr.rel (%p543) target = $region80
      $region79: #{tpu_custom_call.1} parent=5 // pred_region
        %s547 = ssub.s32 %s32, 1
        %s548 = sand.u32 %s71, 1
        %s549 = scalar_lea.sflag [#allocation3], %s548
        %s550 = sand.u32 %s71, 1
        %s551 = smul.addr %s550, 4
        %s552 = scalar_lea.vmem [#allocation2], %s551
        // Predicated region
        $region81: #{tpu_custom_call.1} parent=79 // pred_check
          %p553 = pneg %p84
        $region82: #{tpu_custom_call.1} parent=79 // pred_check_branch
          %555 = sbr.rel (%p553) target = $region84
        $region83: #{tpu_custom_call.1} parent=79 // pred_region
          %556 = dma.done %s549, 64
        $region84: #{tpu_custom_call.1} parent=79 // pred_fallthru
          _
        %s557 = sand.u32 %s37, 1
        %s558 = scalar_lea.sflag [#allocation6], %s557
        %s559 = sand.u32 %s97, 1
        %s560 = smul.addr %s559, 4
        %s561 = scalar_lea.vmem [#allocation5], %s560
        // Predicated region
        $region85: #{tpu_custom_call.1} parent=79 // pred_check
          %p562 = pneg %p110
        $region86: #{tpu_custom_call.1} parent=79 // pred_check_branch
          %564 = sbr.rel (%p562) target = $region88
        $region87: #{tpu_custom_call.1} parent=79 // pred_region
          %565 = dma.done %s558, 64
        $region88: #{tpu_custom_call.1} parent=79 // pred_fallthru
          _
        %s566 = sand.u32 %s37, 1
        %s567 = scalar_lea.sflag [#allocation6], %s566
        %s568 = sand.u32 %s123, 1
        %s569 = smul.addr %s568, 4
        %s570 = scalar_lea.vmem [#allocation7], %s569
        // Predicated region
        $region89: #{tpu_custom_call.1} parent=79 // pred_check
          %p571 = pneg %p136
        $region90: #{tpu_custom_call.1} parent=79 // pred_check_branch
          %573 = sbr.rel (%p571) target = $region92
        $region91: #{tpu_custom_call.1} parent=79 // pred_region
          %574 = dma.done %s567, 64
        $region92: #{tpu_custom_call.1} parent=79 // pred_fallthru
          _
        // Predicated region
        $region93: #{tpu_custom_call.1} parent=79 // pred_check
          %p575 = pneg %p199
        $region94: #{tpu_custom_call.1} parent=79 // pred_check_branch
          %577 = sbr.rel (%p575) target = $region96
        $region95: #{tpu_custom_call.1} parent=79 // pred_region
          %578 = dma.done [#allocation9], 16
        $region96: #{tpu_custom_call.1} parent=79 // pred_fallthru
          _
        // Predicated region
        $region97: #{tpu_custom_call.1} parent=79 // pred_check
          %p579 = pneg %p220
        $region98: #{tpu_custom_call.1} parent=79 // pred_check_branch
          %581 = sbr.rel (%p579) target = $region100
        $region99: #{tpu_custom_call.1} parent=79 // pred_region
          %582 = dma.done [#allocation9], 16
        $region100: #{tpu_custom_call.1} parent=79 // pred_fallthru
          _
        // Predicated region
        $region101: #{tpu_custom_call.1} parent=79 // pred_check
          %p583 = pneg %p262
        $region102: #{tpu_custom_call.1} parent=79 // pred_check_branch
          %585 = sbr.rel (%p583) target = $region104
        $region103: #{tpu_custom_call.1} parent=79 // pred_region
          %586 = dma.done [#allocation12], 16
        $region104: #{tpu_custom_call.1} parent=79 // pred_fallthru
          _
        // Predicated region
        $region105: #{tpu_custom_call.1} parent=79 // pred_check
          %p587 = pneg %p283
        $region106: #{tpu_custom_call.1} parent=79 // pred_check_branch
          %589 = sbr.rel (%p587) target = $region108
        $region107: #{tpu_custom_call.1} parent=79 // pred_region
          %590 = dma.done [#allocation12], 256
        $region108: #{tpu_custom_call.1} parent=79 // pred_fallthru
          _
        %p591 = scmp.lt.s32.totalorder %s37, 1
        %s592 = scalar_select %p591, %s37, 1
        %s593 = smul.addr %s592, 2
        %s594 = smul.addr %s593, 8
        %s595 = scalar_lea.vmem %s0, %s594
        %p596 = pneg %p58
        %p597 = pneg %p55
        %s598 = sand.u32 %s71, 1
        %s599 = scalar_lea.sflag [#allocation3], %s598
        %s600 = sand.u32 %s71, 1
        %s601 = smul.addr %s600, 4
        %s602 = scalar_lea.vmem [#allocation2], %s601
        %p603 = pneg %p84
        %p604 = pneg %p81
        %s605 = sand.u32 %s37, 1
        %s606 = scalar_lea.sflag [#allocation6], %s605
        %s607 = sand.u32 %s97, 1
        %s608 = smul.addr %s607, 4
        %s609 = scalar_lea.vmem [#allocation5], %s608
        %p610 = pneg %p110
        %p611 = pneg %p107
        %s612 = sand.u32 %s37, 1
        %s613 = scalar_lea.sflag [#allocation6], %s612
        %s614 = sand.u32 %s123, 1
        %s615 = smul.addr %s614, 4
        %s616 = scalar_lea.vmem [#allocation7], %s615
        %p617 = pneg %p136
        %p618 = pneg %p133
        %p619 = pneg %p157
        %p620 = pneg %p154
        %p621 = pneg %p178
        %p622 = pneg %p175
        %p623 = pneg %p199
        %p624 = pneg %p196
        %p625 = pneg %p220
        %p626 = pneg %p217
        %p627 = pneg %p241
        %p628 = pneg %p238
        %p629 = pneg %p262
        %p630 = pneg %p259
        %p631 = pneg %p283
        %p632 = pneg %p280
        %p633 = pneg %p304
        %p634 = pneg %p301
        %p635 = pneg %p325
        %p636 = pneg %p322
        %p637 = pneg %p346
        %p638 = pneg %p343
        %p639 = pneg %p367
        %p640 = pneg %p364
        %p641 = pneg %p393
        %p642 = pneg %p390
        %s643 = sand.u32 %s380, 1
        %s644 = scalar_lea.sflag [#allocation4], %s643
        %s645 = sand.u32 %s380, 1
        %s646 = smul.addr %s645, 16
        %s647 = scalar_lea.vmem [#allocation14], %s646
        %p648 = scmp.lt.s32.totalorder %s37, 1
        %s649 = scalar_select %p648, %s37, 1
        %s650 = smul.addr %s649, 2
        %s651 = smul.addr %s650, 8
        %s652 = scalar_lea.vmem %s0, %s651
        %v654 = vld [vmem:[%s652] sm:$0xff]
        %v655 = vld [vmem:[%s652 + $0x8] sm:$0xff]
        %v656 = vpack.c.bf16 %v655, %v654
        %v657 = vld [vmem:[%s4] sm:$0xf]
        %v658 = vld [vmem:[%s4 + $0x4] sm:$0xf]
        %v659 = vld [vmem:[%s4 + $0x8] sm:$0xf]
        %v660 = vld [vmem:[%s4 + $0xc] sm:$0xf]
        %v665 = vunpack.c.l.b16 %v657
        %v666 = vunpack.c.l.b16 %v658
        %v667 = vunpack.c.l.b16 %v659
        %v668 = vunpack.c.l.b16 %v660
        %v669 = vpack.c.b16 %v666, %v665
        %v670 = vpack.c.b16 %v668, %v667
        %vm673 = vcmask 261120
        %v675 = vsel %vm673, %v656, 0
        %677 = vmatprep.subr.bf16.mxu0 0
        %678 = vmatpush1.bf16.msra.mxu0 0
        %679 = vmatprep.subr.bf16.mxu0 0
        %680 = vmatpush1.bf16.msra.mxu0 0
        %681 = vmatprep.subr.bf16.mxu0 0
        %682 = vmatpush1.bf16.msra.mxu0 0
        %683 = vmatprep.subr.bf16.mxu0 0
        %684 = vmatpush1.bf16.msra.mxu0 0
        %685 = vmatprep.subr.bf16.mxu0 0
        %686 = vmatpush1.bf16.msra.mxu0 0
        %687 = vmatprep.subr.bf16.mxu0 0
        %688 = vmatpush1.bf16.msra.mxu0 0
        %689 = vmatprep.subr.bf16.mxu0 0
        %690 = vmatpush1.bf16.msra.mxu0 %v670
        %691 = vmatprep.subr.bf16.mxu0 0
        %692 = vmatpush1.bf16.msra.mxu0 %v669
        %693 = vmatprep.subr.bf16.mxu0 0
        %694 = vmatpush2.bf16.msra.mxu0 0
        %695 = vmatprep.subr.bf16.mxu0 0
        %696 = vmatpush2.bf16.msra.mxu0 0
        %697 = vmatprep.subr.bf16.mxu0 0
        %698 = vmatpush2.bf16.msra.mxu0 0
        %699 = vmatprep.subr.bf16.mxu0 0
        %700 = vmatpush2.bf16.msra.mxu0 0
        %701 = vmatprep.subr.bf16.mxu0 0
        %702 = vmatpush2.bf16.msra.mxu0 0
        %703 = vmatprep.subr.bf16.mxu0 0
        %704 = vmatpush2.bf16.msra.mxu0 0
        %705 = vmatprep.subr.bf16.mxu0 0
        %706 = vmatpush2.bf16.msra.mxu0 0
        %707 = vmatprep.subr.bf16.mxu0 0
        %708 = vmatpush2.bf16.msra.mxu0 0
        %709 = vmatprep.mubr.bf16.mxu0 0
        %710 = vmatmul.mubr.bf16.gmra.mxu0 %v675
        %v711 = vpop.f32.mrf.mxu0
        %v712 = vadd.f32 0.0, %v711
        %v713 = vpop.f32.mrf.mxu0
        %v714 = vpop.f32.mrf.mxu0
        %v715 = vadd.f32 0.0, %v714
        %v716 = vpop.f32.mrf.mxu0
        %717 = vdwg.mxu0
        %v718 = vld [vmem:[%s5] sm:$0xf]
        %v719 = vld [vmem:[%s5 + $0x4] sm:$0xf]
        %v720 = vld [vmem:[%s5 + $0x8] sm:$0xf]
        %v721 = vld [vmem:[%s5 + $0xc] sm:$0xf]
        %v726 = vunpack.c.l.b16 %v718
        %v727 = vunpack.c.l.b16 %v719
        %v728 = vunpack.c.l.b16 %v720
        %v729 = vunpack.c.l.b16 %v721
        %v730 = vpack.c.b16 %v727, %v726
        %v731 = vpack.c.b16 %v729, %v728
        %734 = vmatprep.subr.bf16.mxu0 0
        %735 = vmatpush1.bf16.msra.mxu0 0
        %736 = vmatprep.subr.bf16.mxu0 0
        %737 = vmatpush1.bf16.msra.mxu0 0
        %738 = vmatprep.subr.bf16.mxu0 0
        %739 = vmatpush1.bf16.msra.mxu0 0
        %740 = vmatprep.subr.bf16.mxu0 0
        %741 = vmatpush1.bf16.msra.mxu0 0
        %742 = vmatprep.subr.bf16.mxu0 0
        %743 = vmatpush1.bf16.msra.mxu0 0
        %744 = vmatprep.subr.bf16.mxu0 0
        %745 = vmatpush1.bf16.msra.mxu0 0
        %746 = vmatprep.subr.bf16.mxu0 0
        %747 = vmatpush1.bf16.msra.mxu0 %v731
        %748 = vmatprep.subr.bf16.mxu0 0
        %749 = vmatpush1.bf16.msra.mxu0 %v730
        %750 = vmatprep.subr.bf16.mxu0 0
        %751 = vmatpush2.bf16.msra.mxu0 0
        %752 = vmatprep.subr.bf16.mxu0 0
        %753 = vmatpush2.bf16.msra.mxu0 0
        %754 = vmatprep.subr.bf16.mxu0 0
        %755 = vmatpush2.bf16.msra.mxu0 0
        %756 = vmatprep.subr.bf16.mxu0 0
        %757 = vmatpush2.bf16.msra.mxu0 0
        %758 = vmatprep.subr.bf16.mxu0 0
        %759 = vmatpush2.bf16.msra.mxu0 0
        %760 = vmatprep.subr.bf16.mxu0 0
        %761 = vmatpush2.bf16.msra.mxu0 0
        %762 = vmatprep.subr.bf16.mxu0 0
        %763 = vmatpush2.bf16.msra.mxu0 0
        %764 = vmatprep.subr.bf16.mxu0 0
        %765 = vmatpush2.bf16.msra.mxu0 0
        %766 = vmatprep.mubr.bf16.mxu0 0
        %767 = vmatmul.mubr.bf16.gmra.mxu0 %v675
        %v768 = vpop.f32.mrf.mxu0
        %v769 = vadd.f32 0.0, %v768
        %v770 = vpop.f32.mrf.mxu0
        %v771 = vpop.f32.mrf.mxu0
        %v772 = vadd.f32 0.0, %v771
        %v773 = vpop.f32.mrf.mxu0
        %774 = vdwg.mxu0
        %v775 = vld [vmem:[%s552] sm:$0xf]
        %v776 = vlaneseq
        %v777 = vand.u32 %v776, 127
        %v778 = vlaneseq
        %v779 = vshrl.u32 %v778, 7
        %v780 = vsub.s32 0, %v779
        %v781 = vrot.slane %v775, %v780
        %783 = vbcast.lane.b32.xlu0 %v781, 256
        %v784 = vpop.permute.xlu0 %783
        %s786 = sor.u32 256, 8
        %787 = vbcast.lane.b32.xlu0 %v781, %s786
        %v788 = vpop.permute.xlu0 %787
        %v789 = vlaneseq
        %v790 = vshrl.u32 %v789, 7
        %v791 = vsub.s32 1, %v790
        %v792 = vrot.slane %v775, %v791
        %794 = vbcast.lane.b32.xlu0 %v792, 256
        %v795 = vpop.permute.xlu0 %794
        %s797 = sor.u32 256, 8
        %798 = vbcast.lane.b32.xlu0 %v792, %s797
        %v799 = vpop.permute.xlu0 %798
        %v800 = vlaneseq
        %v801 = vshrl.u32 %v800, 7
        %v802 = vsub.s32 2, %v801
        %v803 = vrot.slane %v775, %v802
        %805 = vbcast.lane.b32.xlu0 %v803, 256
        %v806 = vpop.permute.xlu0 %805
        %s808 = sor.u32 256, 8
        %809 = vbcast.lane.b32.xlu0 %v803, %s808
        %v810 = vpop.permute.xlu0 %809
        %v811 = vlaneseq
        %v812 = vshrl.u32 %v811, 7
        %v813 = vsub.s32 3, %v812
        %v814 = vrot.slane %v775, %v813
        %816 = vbcast.lane.b32.xlu0 %v814, 256
        %v817 = vpop.permute.xlu0 %816
        %s819 = sor.u32 256, 8
        %820 = vbcast.lane.b32.xlu0 %v814, %s819
        %v821 = vpop.permute.xlu0 %820
        %vm822 = vcmp.eq.s32.totalorder %v784, %v777
        %vm823 = vcmp.eq.s32.totalorder %v788, %v777
        %vm824 = vcmp.eq.s32.totalorder %v795, %v777
        %vm825 = vcmp.eq.s32.totalorder %v799, %v777
        %vm826 = vcmp.eq.s32.totalorder %v806, %v777
        %vm827 = vcmp.eq.s32.totalorder %v810, %v777
        %vm828 = vcmp.eq.s32.totalorder %v817, %v777
        %vm829 = vcmp.eq.s32.totalorder %v821, %v777
        %v830 = vsel %vm822, 1, 0
        %v831 = vsel %vm823, 1, 0
        %v832 = vsel %vm824, 1, 0
        %v833 = vsel %vm825, 1, 0
        %v834 = vsel %vm826, 1, 0
        %v835 = vsel %vm827, 1, 0
        %v836 = vsel %vm828, 1, 0
        %v837 = vsel %vm829, 1, 0
        %v838 = vcvt.s32.f32 %v830
        %v839 = vcvt.s32.f32 %v831
        %v840 = vcvt.s32.f32 %v832
        %v841 = vcvt.s32.f32 %v833
        %v842 = vcvt.s32.f32 %v834
        %v843 = vcvt.s32.f32 %v835
        %v844 = vcvt.s32.f32 %v836
        %v845 = vcvt.s32.f32 %v837
        %v846 = vpack.c.bf16 %v839, %v838
        %v847 = vpack.c.bf16 %v841, %v840
        %v848 = vpack.c.bf16 %v843, %v842
        %v849 = vpack.c.bf16 %v845, %v844
        %v850 = vpack.c.bf16 %v772, %v769
        %vm851 = vcmask 130048
        %v853 = vsel %vm851, %v846, 0
        %v856 = vsel %vm851, %v847, 0
        %v859 = vsel %vm851, %v848, 0
        %v862 = vsel %vm851, %v849, 0
        %864 = vmatprep.subr.bf16.mxu0 0
        %865 = vmatpush1.bf16.msra.mxu0 0
        %866 = vmatprep.subr.bf16.mxu0 0
        %867 = vmatpush1.bf16.msra.mxu0 0
        %868 = vmatprep.subr.bf16.mxu0 0
        %869 = vmatpush1.bf16.msra.mxu0 0
        %870 = vmatprep.subr.bf16.mxu0 0
        %871 = vmatpush1.bf16.msra.mxu0 0
        %872 = vmatprep.subr.bf16.mxu0 0
        %873 = vmatpush1.bf16.msra.mxu0 0
        %874 = vmatprep.subr.bf16.mxu0 0
        %875 = vmatpush1.bf16.msra.mxu0 0
        %876 = vmatprep.subr.bf16.mxu0 0
        %877 = vmatpush1.bf16.msra.mxu0 0
        %878 = vmatprep.subr.bf16.mxu0 0
        %879 = vmatpush1.bf16.msra.mxu0 %v850
        %880 = vmatprep.subr.bf16.mxu0 0
        %881 = vmatpush2.bf16.msra.mxu0 0
        %882 = vmatprep.subr.bf16.mxu0 0
        %883 = vmatpush2.bf16.msra.mxu0 0
        %884 = vmatprep.subr.bf16.mxu0 0
        %885 = vmatpush2.bf16.msra.mxu0 0
        %886 = vmatprep.subr.bf16.mxu0 0
        %887 = vmatpush2.bf16.msra.mxu0 0
        %888 = vmatprep.subr.bf16.mxu0 0
        %889 = vmatpush2.bf16.msra.mxu0 0
        %890 = vmatprep.subr.bf16.mxu0 0
        %891 = vmatpush2.bf16.msra.mxu0 0
        %892 = vmatprep.subr.bf16.mxu0 0
        %893 = vmatpush2.bf16.msra.mxu0 0
        %894 = vmatprep.subr.bf16.mxu0 0
        %895 = vmatpush2.bf16.msra.mxu0 0
        %896 = vmatprep.mubr.bf16.mxu0 0
        %897 = vmatmul.mubr.bf16.gmra.mxu0 %v853
        %v898 = vpop.f32.mrf.mxu0
        %v899 = vadd.f32 0.0, %v898
        %v900 = vpop.f32.mrf.mxu0
        %v901 = vpop.f32.mrf.mxu0
        %v902 = vadd.f32 0.0, %v901
        %v903 = vpop.f32.mrf.mxu0
        %904 = vmatprep.mubr.bf16.mxu0 0
        %905 = vmatmul.mubr.bf16.gmra.mxu0 %v856
        %v906 = vpop.f32.mrf.mxu0
        %v907 = vadd.f32 0.0, %v906
        %v908 = vpop.f32.mrf.mxu0
        %v909 = vpop.f32.mrf.mxu0
        %v910 = vadd.f32 0.0, %v909
        %v911 = vpop.f32.mrf.mxu0
        %912 = vmatprep.mubr.bf16.mxu0 0
        %913 = vmatmul.mubr.bf16.gmra.mxu0 %v859
        %v914 = vpop.f32.mrf.mxu0
        %v915 = vadd.f32 0.0, %v914
        %v916 = vpop.f32.mrf.mxu0
        %v917 = vpop.f32.mrf.mxu0
        %v918 = vadd.f32 0.0, %v917
        %v919 = vpop.f32.mrf.mxu0
        %920 = vmatprep.mubr.bf16.mxu0 0
        %921 = vmatmul.mubr.bf16.gmra.mxu0 %v862
        %v922 = vpop.f32.mrf.mxu0
        %v923 = vadd.f32 0.0, %v922
        %v924 = vpop.f32.mrf.mxu0
        %v925 = vpop.f32.mrf.mxu0
        %v926 = vadd.f32 0.0, %v925
        %v927 = vpop.f32.mrf.mxu0
        %928 = vdwg.mxu0
        %v929 = vld [vmem:[%s561] sm:$0xf]
        %v930 = vadd.f32 %v712, %v899
        %v931 = vadd.f32 %v715, %v902
        %v932 = vadd.f32 %v712, %v907
        %v933 = vadd.f32 %v715, %v910
        %v934 = vadd.f32 %v712, %v915
        %v935 = vadd.f32 %v715, %v918
        %v936 = vadd.f32 %v712, %v923
        %v937 = vadd.f32 %v715, %v926
        %v938 = vlaneseq
        %v939 = vshrl.u32 %v938, 7
        %v940 = vsub.s32 0, %v939
        %v941 = vrot.slane %v929, %v940
        %943 = vbcast.lane.b32.xlu0 %v941, 256
        %v944 = vpop.permute.xlu0 %943
        %s946 = sor.u32 256, 8
        %947 = vbcast.lane.b32.xlu0 %v941, %s946
        %v948 = vpop.permute.xlu0 %947
        %v949 = vlaneseq
        %v950 = vshrl.u32 %v949, 7
        %v951 = vsub.s32 1, %v950
        %v952 = vrot.slane %v929, %v951
        %954 = vbcast.lane.b32.xlu0 %v952, 256
        %v955 = vpop.permute.xlu0 %954
        %s957 = sor.u32 256, 8
        %958 = vbcast.lane.b32.xlu0 %v952, %s957
        %v959 = vpop.permute.xlu0 %958
        %v960 = vlaneseq
        %v961 = vshrl.u32 %v960, 7
        %v962 = vsub.s32 2, %v961
        %v963 = vrot.slane %v929, %v962
        %965 = vbcast.lane.b32.xlu0 %v963, 256
        %v966 = vpop.permute.xlu0 %965
        %s968 = sor.u32 256, 8
        %969 = vbcast.lane.b32.xlu0 %v963, %s968
        %v970 = vpop.permute.xlu0 %969
        %v971 = vlaneseq
        %v972 = vshrl.u32 %v971, 7
        %v973 = vsub.s32 3, %v972
        %v974 = vrot.slane %v929, %v973
        %976 = vbcast.lane.b32.xlu0 %v974, 256
        %v977 = vpop.permute.xlu0 %976
        %s979 = sor.u32 256, 8
        %980 = vbcast.lane.b32.xlu0 %v974, %s979
        %v981 = vpop.permute.xlu0 %980
        %v982 = vld [vmem:[#allocation8] sm:$0x1]
        %v984 = vlaneseq
        %v985 = vshrl.u32 %v984, 7
        %v986 = vsub.s32 0, %v985
        %v987 = vrot.slane %v982, %v986
        %v989 = vmul.f32 %v944, %v987
        %v990 = vmul.f32 %v948, %v987
        %v991 = vmul.f32 %v955, %v987
        %v992 = vmul.f32 %v959, %v987
        %v993 = vmul.f32 %v966, %v987
        %v994 = vmul.f32 %v970, %v987
        %v995 = vmul.f32 %v977, %v987
        %v996 = vmul.f32 %v981, %v987
        %v997 = vadd.f32 %v930, %v989
        %v998 = vadd.f32 %v931, %v990
        %v999 = vadd.f32 %v932, %v991
        %v1000 = vadd.f32 %v933, %v992
        %v1001 = vadd.f32 %v934, %v993
        %v1002 = vadd.f32 %v935, %v994
        %v1003 = vadd.f32 %v936, %v995
        %v1004 = vadd.f32 %v937, %v996
        %v1005 = vld [vmem:[#allocation10] sm:$0x1]
        %v1007 = vlaneseq
        %v1008 = vshrl.u32 %v1007, 7
        %v1009 = vsub.s32 0, %v1008
        %v1010 = vrot.slane %v1005, %v1009
        %v1012 = vadd.f32 %v997, %v1010
        %v1013 = vadd.f32 %v998, %v1010
        %v1014 = vadd.f32 %v999, %v1010
        %v1015 = vadd.f32 %v1000, %v1010
        %v1016 = vadd.f32 %v1001, %v1010
        %v1017 = vadd.f32 %v1002, %v1010
        %v1018 = vadd.f32 %v1003, %v1010
        %v1019 = vadd.f32 %v1004, %v1010
        %v1020 = vxor.u32 %v1012, 2147483648
        %v1021 = vxor.u32 %v1013, 2147483648
        %v1022 = vxor.u32 %v1014, 2147483648
        %v1023 = vxor.u32 %v1015, 2147483648
        %v1024 = vxor.u32 %v1016, 2147483648
        %v1025 = vxor.u32 %v1017, 2147483648
        %v1026 = vxor.u32 %v1018, 2147483648
        %v1027 = vxor.u32 %v1019, 2147483648
        %v1028 = vmul.f32 %v1020, 1.442695
        %v1029 = vpow.pop %v1028
        %v1030 = vmul.f32 %v1021, 1.442695
        %v1031 = vpow.pop %v1030
        %v1032 = vmul.f32 %v1022, 1.442695
        %v1033 = vpow.pop %v1032
        %v1034 = vmul.f32 %v1023, 1.442695
        %v1035 = vpow.pop %v1034
        %v1036 = vmul.f32 %v1024, 1.442695
        %v1037 = vpow.pop %v1036
        %v1038 = vmul.f32 %v1025, 1.442695
        %v1039 = vpow.pop %v1038
        %v1040 = vmul.f32 %v1026, 1.442695
        %v1041 = vpow.pop %v1040
        %v1042 = vmul.f32 %v1027, 1.442695
        %v1043 = vpow.pop %v1042
        %v1044 = vadd.f32 %v1029, 1.0
        %v1045 = vadd.f32 %v1031, 1.0
        %v1046 = vadd.f32 %v1033, 1.0
        %v1047 = vadd.f32 %v1035, 1.0
        %v1048 = vadd.f32 %v1037, 1.0
        %v1049 = vadd.f32 %v1039, 1.0
        %v1050 = vadd.f32 %v1041, 1.0
        %v1051 = vadd.f32 %v1043, 1.0
        %v1052 = vrcp.pop %v1044
        %v1053 = vmul.f32 1.0, %v1052
        %v1054 = vrcp.pop %v1045
        %v1055 = vmul.f32 1.0, %v1054
        %v1056 = vrcp.pop %v1046
        %v1057 = vmul.f32 1.0, %v1056
        %v1058 = vrcp.pop %v1047
        %v1059 = vmul.f32 1.0, %v1058
        %v1060 = vrcp.pop %v1048
        %v1061 = vmul.f32 1.0, %v1060
        %v1062 = vrcp.pop %v1049
        %v1063 = vmul.f32 1.0, %v1062
        %v1064 = vrcp.pop %v1050
        %v1065 = vmul.f32 1.0, %v1064
        %v1066 = vrcp.pop %v1051
        %v1067 = vmul.f32 1.0, %v1066
        %v1068 = vmul.f32 %v1012, %v1053
        %v1069 = vmul.f32 %v1013, %v1055
        %v1070 = vmul.f32 %v1014, %v1057
        %v1071 = vmul.f32 %v1015, %v1059
        %v1072 = vmul.f32 %v1016, %v1061
        %v1073 = vmul.f32 %v1017, %v1063
        %v1074 = vmul.f32 %v1018, %v1065
        %v1075 = vmul.f32 %v1019, %v1067
        %v1076 = vpack.c.bf16 %v1069, %v1068
        %v1077 = vpack.c.bf16 %v1071, %v1070
        %v1078 = vpack.c.bf16 %v1073, %v1072
        %v1079 = vpack.c.bf16 %v1075, %v1074
        %v1080 = vld [vmem:[%s8] sm:$0xf]
        %v1081 = vld [vmem:[%s8 + $0x4] sm:$0xf]
        %v1082 = vld [vmem:[%s8 + $0x8] sm:$0xf]
        %v1083 = vld [vmem:[%s8 + $0xc] sm:$0xf]
        %v1084 = vld [vmem:[#allocation11] sm:$0x1]
        %v1086 = vlaneseq
        %v1087 = vshrl.u32 %v1086, 7
        %v1088 = vsub.s32 0, %v1087
        %v1089 = vrot.slane %v1084, %v1088
        %v1095 = vunpack.c.l.b16 %v1080
        %v1096 = vunpack.c.l.b16 %v1081
        %v1097 = vunpack.c.l.b16 %v1082
        %v1098 = vunpack.c.l.b16 %v1083
        %v1099 = vpack.c.b16 %v1096, %v1095
        %v1100 = vpack.c.b16 %v1098, %v1097
        %v1104 = vsel %vm673, %v1076, 0
        %v1107 = vsel %vm673, %v1077, 0
        %v1110 = vsel %vm673, %v1078, 0
        %v1113 = vsel %vm673, %v1079, 0
        %1115 = vmatprep.subr.bf16.mxu0 0
        %1116 = vmatpush1.bf16.msra.mxu0 0
        %1117 = vmatprep.subr.bf16.mxu0 0
        %1118 = vmatpush1.bf16.msra.mxu0 0
        %1119 = vmatprep.subr.bf16.mxu0 0
        %1120 = vmatpush1.bf16.msra.mxu0 0
        %1121 = vmatprep.subr.bf16.mxu0 0
        %1122 = vmatpush1.bf16.msra.mxu0 0
        %1123 = vmatprep.subr.bf16.mxu0 0
        %1124 = vmatpush1.bf16.msra.mxu0 0
        %1125 = vmatprep.subr.bf16.mxu0 0
        %1126 = vmatpush1.bf16.msra.mxu0 0
        %1127 = vmatprep.subr.bf16.mxu0 0
        %1128 = vmatpush1.bf16.msra.mxu0 %v1100
        %1129 = vmatprep.subr.bf16.mxu0 0
        %1130 = vmatpush1.bf16.msra.mxu0 %v1099
        %1131 = vmatprep.subr.bf16.mxu0 0
        %1132 = vmatpush2.bf16.msra.mxu0 0
        %1133 = vmatprep.subr.bf16.mxu0 0
        %1134 = vmatpush2.bf16.msra.mxu0 0
        %1135 = vmatprep.subr.bf16.mxu0 0
        %1136 = vmatpush2.bf16.msra.mxu0 0
        %1137 = vmatprep.subr.bf16.mxu0 0
        %1138 = vmatpush2.bf16.msra.mxu0 0
        %1139 = vmatprep.subr.bf16.mxu0 0
        %1140 = vmatpush2.bf16.msra.mxu0 0
        %1141 = vmatprep.subr.bf16.mxu0 0
        %1142 = vmatpush2.bf16.msra.mxu0 0
        %1143 = vmatprep.subr.bf16.mxu0 0
        %1144 = vmatpush2.bf16.msra.mxu0 0
        %1145 = vmatprep.subr.bf16.mxu0 0
        %1146 = vmatpush2.bf16.msra.mxu0 0
        %1147 = vmatprep.mubr.bf16.mxu0 0
        %1148 = vmatmul.mubr.bf16.gmra.mxu0 %v1104
        %v1149 = vpop.f32.mrf.mxu0
        %v1150 = vadd.f32 %v1089, %v1149
        %v1151 = vpop.f32.mrf.mxu0
        %v1152 = vpop.f32.mrf.mxu0
        %v1153 = vadd.f32 %v1089, %v1152
        %v1154 = vpop.f32.mrf.mxu0
        %1155 = vmatprep.mubr.bf16.mxu0 0
        %1156 = vmatmul.mubr.bf16.gmra.mxu0 %v1107
        %v1157 = vpop.f32.mrf.mxu0
        %v1158 = vadd.f32 %v1089, %v1157
        %v1159 = vpop.f32.mrf.mxu0
        %v1160 = vpop.f32.mrf.mxu0
        %v1161 = vadd.f32 %v1089, %v1160
        %v1162 = vpop.f32.mrf.mxu0
        %1163 = vmatprep.mubr.bf16.mxu0 0
        %1164 = vmatmul.mubr.bf16.gmra.mxu0 %v1110
        %v1165 = vpop.f32.mrf.mxu0
        %v1166 = vadd.f32 %v1089, %v1165
        %v1167 = vpop.f32.mrf.mxu0
        %v1168 = vpop.f32.mrf.mxu0
        %v1169 = vadd.f32 %v1089, %v1168
        %v1170 = vpop.f32.mrf.mxu0
        %1171 = vmatprep.mubr.bf16.mxu0 0
        %1172 = vmatmul.mubr.bf16.gmra.mxu0 %v1113
        %v1173 = vpop.f32.mrf.mxu0
        %v1174 = vadd.f32 %v1089, %v1173
        %v1175 = vpop.f32.mrf.mxu0
        %v1176 = vpop.f32.mrf.mxu0
        %v1177 = vadd.f32 %v1089, %v1176
        %v1178 = vpop.f32.mrf.mxu0
        %1179 = vdwg.mxu0
        %v1180 = vxor.u32 %v1150, 2147483648
        %v1181 = vxor.u32 %v1153, 2147483648
        %v1182 = vxor.u32 %v1158, 2147483648
        %v1183 = vxor.u32 %v1161, 2147483648
        %v1184 = vxor.u32 %v1166, 2147483648
        %v1185 = vxor.u32 %v1169, 2147483648
        %v1186 = vxor.u32 %v1174, 2147483648
        %v1187 = vxor.u32 %v1177, 2147483648
        %v1188 = vmul.f32 %v1180, 1.442695
        %v1189 = vpow.pop %v1188
        %v1190 = vmul.f32 %v1181, 1.442695
        %v1191 = vpow.pop %v1190
        %v1192 = vmul.f32 %v1182, 1.442695
        %v1193 = vpow.pop %v1192
        %v1194 = vmul.f32 %v1183, 1.442695
        %v1195 = vpow.pop %v1194
        %v1196 = vmul.f32 %v1184, 1.442695
        %v1197 = vpow.pop %v1196
        %v1198 = vmul.f32 %v1185, 1.442695
        %v1199 = vpow.pop %v1198
        %v1200 = vmul.f32 %v1186, 1.442695
        %v1201 = vpow.pop %v1200
        %v1202 = vmul.f32 %v1187, 1.442695
        %v1203 = vpow.pop %v1202
        %v1204 = vadd.f32 %v1189, 1.0
        %v1205 = vadd.f32 %v1191, 1.0
        %v1206 = vadd.f32 %v1193, 1.0
        %v1207 = vadd.f32 %v1195, 1.0
        %v1208 = vadd.f32 %v1197, 1.0
        %v1209 = vadd.f32 %v1199, 1.0
        %v1210 = vadd.f32 %v1201, 1.0
        %v1211 = vadd.f32 %v1203, 1.0
        %v1212 = vrcp.pop %v1204
        %v1213 = vmul.f32 1.0, %v1212
        %v1214 = vrcp.pop %v1205
        %v1215 = vmul.f32 1.0, %v1214
        %v1216 = vrcp.pop %v1206
        %v1217 = vmul.f32 1.0, %v1216
        %v1218 = vrcp.pop %v1207
        %v1219 = vmul.f32 1.0, %v1218
        %v1220 = vrcp.pop %v1208
        %v1221 = vmul.f32 1.0, %v1220
        %v1222 = vrcp.pop %v1209
        %v1223 = vmul.f32 1.0, %v1222
        %v1224 = vrcp.pop %v1210
        %v1225 = vmul.f32 1.0, %v1224
        %v1226 = vrcp.pop %v1211
        %v1227 = vmul.f32 1.0, %v1226
        %v1228 = vmul.f32 %v1150, %v1213
        %v1229 = vmul.f32 %v1153, %v1215
        %v1230 = vmul.f32 %v1158, %v1217
        %v1231 = vmul.f32 %v1161, %v1219
        %v1232 = vmul.f32 %v1166, %v1221
        %v1233 = vmul.f32 %v1169, %v1223
        %v1234 = vmul.f32 %v1174, %v1225
        %v1235 = vmul.f32 %v1177, %v1227
        %v1236 = vld [vmem:[%s570] sm:$0xf]
        %v1237 = vlaneseq
        %v1238 = vshrl.u32 %v1237, 7
        %v1239 = vsub.s32 0, %v1238
        %v1240 = vrot.slane %v1236, %v1239
        %1242 = vbcast.lane.b32.xlu0 %v1240, 256
        %v1243 = vpop.permute.xlu0 %1242
        %s1245 = sor.u32 256, 8
        %1246 = vbcast.lane.b32.xlu0 %v1240, %s1245
        %v1247 = vpop.permute.xlu0 %1246
        %v1248 = vlaneseq
        %v1249 = vshrl.u32 %v1248, 7
        %v1250 = vsub.s32 1, %v1249
        %v1251 = vrot.slane %v1236, %v1250
        %1253 = vbcast.lane.b32.xlu0 %v1251, 256
        %v1254 = vpop.permute.xlu0 %1253
        %s1256 = sor.u32 256, 8
        %1257 = vbcast.lane.b32.xlu0 %v1251, %s1256
        %v1258 = vpop.permute.xlu0 %1257
        %v1259 = vlaneseq
        %v1260 = vshrl.u32 %v1259, 7
        %v1261 = vsub.s32 2, %v1260
        %v1262 = vrot.slane %v1236, %v1261
        %1264 = vbcast.lane.b32.xlu0 %v1262, 256
        %v1265 = vpop.permute.xlu0 %1264
        %s1267 = sor.u32 256, 8
        %1268 = vbcast.lane.b32.xlu0 %v1262, %s1267
        %v1269 = vpop.permute.xlu0 %1268
        %v1270 = vlaneseq
        %v1271 = vshrl.u32 %v1270, 7
        %v1272 = vsub.s32 3, %v1271
        %v1273 = vrot.slane %v1236, %v1272
        %1275 = vbcast.lane.b32.xlu0 %v1273, 256
        %v1276 = vpop.permute.xlu0 %1275
        %s1278 = sor.u32 256, 8
        %1279 = vbcast.lane.b32.xlu0 %v1273, %s1278
        %v1280 = vpop.permute.xlu0 %1279
        %v1281 = vmul.f32 %v1228, %v1243
        %v1282 = vmul.f32 %v1229, %v1247
        %v1283 = vmul.f32 %v1230, %v1254
        %v1284 = vmul.f32 %v1231, %v1258
        %v1285 = vmul.f32 %v1232, %v1265
        %v1286 = vmul.f32 %v1233, %v1269
        %v1287 = vmul.f32 %v1234, %v1276
        %v1288 = vmul.f32 %v1235, %v1280
        %v1289 = vsel %vm851, %v1281, 0.0
        %v1290 = vsel %vm851, %v1283, 0.0
        %v1291 = vadd.f32 %v1289, %v1290
        %v1292 = vsel %vm851, %v1285, 0.0
        %v1293 = vadd.f32 %v1291, %v1292
        %v1294 = vsel %vm851, %v1287, 0.0
        %v1295 = vadd.f32 %v1293, %v1294
        %v1296 = vsel %vm851, %v1282, 0.0
        %v1297 = vsel %vm851, %v1284, 0.0
        %v1298 = vadd.f32 %v1296, %v1297
        %v1299 = vsel %vm851, %v1286, 0.0
        %v1300 = vadd.f32 %v1298, %v1299
        %v1301 = vsel %vm851, %v1288, 0.0
        %v1302 = vadd.f32 %v1300, %v1301
        %v1303 = vld [vmem:[#allocation13] sm:$0xf]
        %v1304 = vld [vmem:[#allocation13 + $0x4] sm:$0xf]
        %v1305 = vld [vmem:[#allocation13 + $0x8] sm:$0xf]
        %v1306 = vld [vmem:[#allocation13 + $0xc] sm:$0xf]
        %v1307 = vpack.c.bf16 %v1302, %v1295
        %v1308 = vld [vmem:[%s11] sm:$0xf]
        %v1309 = vld [vmem:[%s11 + $0x4] sm:$0xf]
        %v1312 = vunpack.c.l.b16 %v1308
        %v1313 = vunpack.c.l.b16 %v1309
        %v1314 = vpack.c.b16 %v1313, %v1312
        %v1317 = vsel %vm851, %v1307, 0
        %1319 = vmatprep.subr.bf16.mxu0 0
        %1320 = vmatpush1.bf16.msra.mxu0 0
        %1321 = vmatprep.subr.bf16.mxu0 0
        %1322 = vmatpush1.bf16.msra.mxu0 0
        %1323 = vmatprep.subr.bf16.mxu0 0
        %1324 = vmatpush1.bf16.msra.mxu0 0
        %1325 = vmatprep.subr.bf16.mxu0 0
        %1326 = vmatpush1.bf16.msra.mxu0 0
        %1327 = vmatprep.subr.bf16.mxu0 0
        %1328 = vmatpush1.bf16.msra.mxu0 0
        %1329 = vmatprep.subr.bf16.mxu0 0
        %1330 = vmatpush1.bf16.msra.mxu0 0
        %1331 = vmatprep.subr.bf16.mxu0 0
        %1332 = vmatpush1.bf16.msra.mxu0 0
        %1333 = vmatprep.subr.bf16.mxu0 0
        %1334 = vmatpush1.bf16.msra.mxu0 %v1314
        %1335 = vmatprep.subr.bf16.mxu0 0
        %1336 = vmatpush2.bf16.msra.mxu0 0
        %1337 = vmatprep.subr.bf16.mxu0 0
        %1338 = vmatpush2.bf16.msra.mxu0 0
        %1339 = vmatprep.subr.bf16.mxu0 0
        %1340 = vmatpush2.bf16.msra.mxu0 0
        %1341 = vmatprep.subr.bf16.mxu0 0
        %1342 = vmatpush2.bf16.msra.mxu0 0
        %1343 = vmatprep.subr.bf16.mxu0 0
        %1344 = vmatpush2.bf16.msra.mxu0 0
        %1345 = vmatprep.subr.bf16.mxu0 0
        %1346 = vmatpush2.bf16.msra.mxu0 0
        %1347 = vmatprep.subr.bf16.mxu0 0
        %1348 = vmatpush2.bf16.msra.mxu0 0
        %1349 = vmatprep.subr.bf16.mxu0 0
        %1350 = vmatpush2.bf16.msra.mxu0 0
        %1351 = vmatprep.mubr.bf16.mxu0 0
        %1352 = vmatmul.mubr.bf16.gmra.mxu0 %v1317
        %v1353 = vpop.f32.mrf.mxu0
        %v1354 = vadd.f32 0.0, %v1353
        %v1355 = vpop.f32.mrf.mxu0
        %v1356 = vpop.f32.mrf.mxu0
        %v1357 = vadd.f32 0.0, %v1356
        %v1358 = vpop.f32.mrf.mxu0
        %1359 = vdwg.mxu0
        %v1364 = vunpack.c.l.b16 %v1303
        %v1365 = vunpack.c.l.b16 %v1304
        %v1366 = vunpack.c.l.b16 %v1305
        %v1367 = vunpack.c.l.b16 %v1306
        %v1368 = vpack.c.b16 %v1365, %v1364
        %v1369 = vpack.c.b16 %v1367, %v1366
        %1372 = vmatprep.subr.bf16.mxu0 0
        %1373 = vmatpush1.bf16.msra.mxu0 0
        %1374 = vmatprep.subr.bf16.mxu0 0
        %1375 = vmatpush1.bf16.msra.mxu0 0
        %1376 = vmatprep.subr.bf16.mxu0 0
        %1377 = vmatpush1.bf16.msra.mxu0 0
        %1378 = vmatprep.subr.bf16.mxu0 0
        %1379 = vmatpush1.bf16.msra.mxu0 0
        %1380 = vmatprep.subr.bf16.mxu0 0
        %1381 = vmatpush1.bf16.msra.mxu0 0
        %1382 = vmatprep.subr.bf16.mxu0 0
        %1383 = vmatpush1.bf16.msra.mxu0 0
        %1384 = vmatprep.subr.bf16.mxu0 0
        %1385 = vmatpush1.bf16.msra.mxu0 %v1369
        %1386 = vmatprep.subr.bf16.mxu0 0
        %1387 = vmatpush1.bf16.msra.mxu0 %v1368
        %1388 = vmatprep.subr.bf16.mxu0 0
        %1389 = vmatpush2.bf16.msra.mxu0 0
        %1390 = vmatprep.subr.bf16.mxu0 0
        %1391 = vmatpush2.bf16.msra.mxu0 0
        %1392 = vmatprep.subr.bf16.mxu0 0
        %1393 = vmatpush2.bf16.msra.mxu0 0
        %1394 = vmatprep.subr.bf16.mxu0 0
        %1395 = vmatpush2.bf16.msra.mxu0 0
        %1396 = vmatprep.subr.bf16.mxu0 0
        %1397 = vmatpush2.bf16.msra.mxu0 0
        %1398 = vmatprep.subr.bf16.mxu0 0
        %1399 = vmatpush2.bf16.msra.mxu0 0
        %1400 = vmatprep.subr.bf16.mxu0 0
        %1401 = vmatpush2.bf16.msra.mxu0 0
        %1402 = vmatprep.subr.bf16.mxu0 0
        %1403 = vmatpush2.bf16.msra.mxu0 0
        %1404 = vmatprep.mubr.bf16.mxu0 0
        %1405 = vmatmul.mubr.bf16.gmra.mxu0 %v675
        %v1406 = vpop.f32.mrf.mxu0
        %v1407 = vadd.f32 %v1354, %v1406
        %v1408 = vpop.f32.mrf.mxu0
        %v1409 = vpop.f32.mrf.mxu0
        %v1410 = vadd.f32 %v1357, %v1409
        %v1411 = vpop.f32.mrf.mxu0
        %1412 = vdwg.mxu0
        %v1413 = vld [vmem:[%s12] sm:$0x1]
        %v1415 = vlaneseq
        %v1416 = vshrl.u32 %v1415, 7
        %v1417 = vsub.s32 0, %v1416
        %v1418 = vrot.slane %v1413, %v1417
        %v1420 = vadd.f32 %v1407, %v1418
        %v1421 = vadd.f32 %v1410, %v1418
        %v1422 = vxor.u32 %v1420, 2147483648
        %v1423 = vxor.u32 %v1421, 2147483648
        %v1424 = vmul.f32 %v1422, 1.442695
        %v1425 = vpow.pop %v1424
        %v1426 = vmul.f32 %v1423, 1.442695
        %v1427 = vpow.pop %v1426
        %v1428 = vadd.f32 %v1425, 1.0
        %v1429 = vadd.f32 %v1427, 1.0
        %v1430 = vrcp.pop %v1428
        %v1431 = vmul.f32 1.0, %v1430
        %v1432 = vrcp.pop %v1429
        %v1433 = vmul.f32 1.0, %v1432
        %v1434 = vmul.f32 %v1420, %v1431
        %v1435 = vmul.f32 %v1421, %v1433
        %v1436 = vpack.c.bf16 %v1435, %v1434
        %v1437 = vld [vmem:[%s13] sm:$0xf]
        %v1438 = vld [vmem:[%s13 + $0x4] sm:$0xf]
        %v1439 = vld [vmem:[%s13 + $0x8] sm:$0xf]
        %v1440 = vld [vmem:[%s13 + $0xc] sm:$0xf]
        %v1441 = vld [vmem:[%s13 + $0x10] sm:$0xf]
        %v1442 = vld [vmem:[%s13 + $0x14] sm:$0xf]
        %v1443 = vld [vmem:[%s13 + $0x18] sm:$0xf]
        %v1444 = vld [vmem:[%s13 + $0x1c] sm:$0xf]
        %v1445 = vld [vmem:[%s14] sm:$0x1]
        %v1447 = vlaneseq
        %v1448 = vshrl.u32 %v1447, 7
        %v1449 = vsub.s32 0, %v1448
        %v1450 = vrot.slane %v1445, %v1449
        %v1460 = vunpack.c.l.b16 %v1437
        %v1461 = vunpack.c.l.b16 %v1438
        %v1462 = vunpack.c.l.b16 %v1439
        %v1463 = vunpack.c.l.b16 %v1440
        %v1464 = vunpack.c.l.b16 %v1441
        %v1465 = vunpack.c.l.b16 %v1442
        %v1466 = vunpack.c.l.b16 %v1443
        %v1467 = vunpack.c.l.b16 %v1444
        %v1468 = vpack.c.b16 %v1461, %v1460
        %v1469 = vpack.c.b16 %v1463, %v1462
        %v1470 = vpack.c.b16 %v1465, %v1464
        %v1471 = vpack.c.b16 %v1467, %v1466
        %vm1476 = vcmask 523264
        %v1478 = vsel %vm1476, %v1436, 0
        %1480 = vmatprep.subr.bf16.mxu0 0
        %1481 = vmatpush1.bf16.msra.mxu0 0
        %1482 = vmatprep.subr.bf16.mxu0 0
        %1483 = vmatpush1.bf16.msra.mxu0 0
        %1484 = vmatprep.subr.bf16.mxu0 0
        %1485 = vmatpush1.bf16.msra.mxu0 0
        %1486 = vmatprep.subr.bf16.mxu0 0
        %1487 = vmatpush1.bf16.msra.mxu0 0
        %1488 = vmatprep.subr.bf16.mxu0 0
        %1489 = vmatpush1.bf16.msra.mxu0 %v1471
        %1490 = vmatprep.subr.bf16.mxu0 0
        %1491 = vmatpush1.bf16.msra.mxu0 %v1470
        %1492 = vmatprep.subr.bf16.mxu0 0
        %1493 = vmatpush1.bf16.msra.mxu0 %v1469
        %1494 = vmatprep.subr.bf16.mxu0 0
        %1495 = vmatpush1.bf16.msra.mxu0 %v1468
        %1496 = vmatprep.subr.bf16.mxu0 0
        %1497 = vmatpush2.bf16.msra.mxu0 0
        %1498 = vmatprep.subr.bf16.mxu0 0
        %1499 = vmatpush2.bf16.msra.mxu0 0
        %1500 = vmatprep.subr.bf16.mxu0 0
        %1501 = vmatpush2.bf16.msra.mxu0 0
        %1502 = vmatprep.subr.bf16.mxu0 0
        %1503 = vmatpush2.bf16.msra.mxu0 0
        %1504 = vmatprep.subr.bf16.mxu0 0
        %1505 = vmatpush2.bf16.msra.mxu0 0
        %1506 = vmatprep.subr.bf16.mxu0 0
        %1507 = vmatpush2.bf16.msra.mxu0 0
        %1508 = vmatprep.subr.bf16.mxu0 0
        %1509 = vmatpush2.bf16.msra.mxu0 0
        %1510 = vmatprep.subr.bf16.mxu0 0
        %1511 = vmatpush2.bf16.msra.mxu0 0
        %1512 = vmatprep.mubr.bf16.mxu0 0
        %1513 = vmatmul.mubr.bf16.gmra.mxu0 %v1478
        %v1514 = vpop.f32.mrf.mxu0
        %v1515 = vadd.f32 %v1450, %v1514
        %v1516 = vpop.f32.mrf.mxu0
        %v1517 = vpop.f32.mrf.mxu0
        %v1518 = vadd.f32 %v1450, %v1517
        %v1519 = vpop.f32.mrf.mxu0
        %1520 = vdwg.mxu0
        %v1521 = vadd.f32 %v1515, %v654
        %v1522 = vadd.f32 %v1518, %v655
        %1523 = vst.msk [vmem:[%s647] sm:$0xff] %vm673, %v1521
        %1524 = vst.msk [vmem:[%s647 + $0x8] sm:$0xff] %vm673, %v1522
        %s1525 = sand.u32 %s380, 1
        %s1526 = scalar_lea.sflag [#allocation4], %s1525
        %s1527 = sand.u32 %s380, 1
        %s1528 = smul.addr %s1527, 16
        %s1529 = scalar_lea.vmem [#allocation14], %s1528
        // Predicated region
        $region109: #{tpu_custom_call.1} parent=79 // pred_check
          %p1530 = pneg %p390
        $region110: #{tpu_custom_call.1} parent=79 // pred_check_branch
          %1532 = sbr.rel (%p1530) target = $region112
        $region111: #{tpu_custom_call.1} parent=79 // pred_region
          %s1534 = ssub.s32 256, 256
          %1535 = vsyncadd %s1526, %s1534
          %s1536 = smul.addr %s37, 2
          %s1537 = smul.addr %s1536, 128
          %s1538 = scalar_lea.hbm %s15, %s1537
          %s1539 = sshll.u32 %s1529, 4
          %s1540 = int_to_ptr.vmem [resolvable:$true] %s1539
          %1545 = dma.vmem_to_hbm [thread:$0]  %s1540, 256, %s1538, %s1526, 128, 128, 8
        $region112: #{tpu_custom_call.1} parent=79 // pred_fallthru
          _
      $region80: #{tpu_custom_call.1} parent=5 // pred_fallthru
        _
      %p1546 = scmp.le.s32.totalorder 2, %s32
      // Predicated region
      $region113: #{tpu_custom_call.1} parent=5 // pred_check
        %p1547 = pneg %p1546
      $region114: #{tpu_custom_call.1} parent=5 // pred_check_branch
        %1549 = sbr.rel (%p1547) target = $region116
      $region115: #{tpu_custom_call.1} parent=5 // pred_region
        %s1550 = ssub.s32 %s32, 2
        // Predicated region
        $region117: #{tpu_custom_call.1} parent=115 // pred_check
          %p1551 = pneg %p396
        $region118: #{tpu_custom_call.1} parent=115 // pred_check_branch
          %1553 = sbr.rel (%p1551) target = $region120
        $region119: #{tpu_custom_call.1} parent=115 // pred_region
          %s1554 = sand.u32 %s381, 1
          %s1555 = scalar_lea.sflag [#allocation4], %s1554
          %s1556 = sand.u32 %s381, 1
          %s1557 = smul.addr %s1556, 16
          %s1558 = scalar_lea.vmem [#allocation14], %s1557
          %1559 = dma.done %s1555, 256
        $region120: #{tpu_custom_call.1} parent=115 // pred_fallthru
          _
      $region116: #{tpu_custom_call.1} parent=5 // pred_fallthru
        _
    $region6: #{tpu_custom_call.1} parent=1 // loop_footer
      %s36 = sadd.s32 1, %s32
    $region7: #{tpu_custom_call.1} parent=1 // loop_footer_branch
      %31 = sbr.rel target = $region3
    $region8: #{tpu_custom_call.1} parent=1 // loop_exit
      _
    %1560 = vsyncpa [#allocation3], 1
    %s1561 = scalar_lea.sflag [#allocation3], 1
    %1562 = vsyncpa %s1561, 1
    %1563 = vsyncpa [#allocation6], 1
    %s1564 = scalar_lea.sflag [#allocation6], 1
    %1565 = vsyncpa %s1564, 1
    %1566 = vsyncpa [#allocation9], 1
    %1567 = vsyncpa [#allocation12], 1
    %1568 = vsyncpa [#allocation4], 1
    %s1569 = scalar_lea.sflag [#allocation4], 1
    %1570 = vsyncpa %s1569, 1

</llo_original>
